<compile_context>
chip_gen: v6e
topology: v6e:2x2x1
jax: 0.10.0
libtpu: 0.0.40
codegen_flags: <defaults>
</compile_context>

<pallas_src>
import jax
import jax.numpy as jnp
from jax import lax
from jax.experimental import pallas as pl
from jax.experimental.pallas import tpu as pltpu

_IGNORE = -100  # nn.CrossEntropyLoss default ignore_index


def _medusa_ce_kernel(logits_ref, labels_ref, sum_ref, cnt_ref,
                      m_acc, l_acc, g_acc):
    # logits_ref: (1, B, ts, tv) native dtype    labels_ref: (1, B, ts) int32
    # sum_ref / cnt_ref: (1, 1, 8, 128) f32 lane-dense partial-result slabs
    # m_acc / l_acc / g_acc: (B, ts) f32 VMEM scratch (persist across vocab tiles)
    v = pl.program_id(2)
    n_v = pl.num_programs(2)
    tv = logits_ref.shape[3]

    @pl.when(v == 0)
    def _():
        m_acc[...] = jnp.full(m_acc.shape, -jnp.inf, dtype=jnp.float32)
        l_acc[...] = jnp.zeros(l_acc.shape, dtype=jnp.float32)
        g_acc[...] = jnp.zeros(g_acc.shape, dtype=jnp.float32)

    # Per-tile cast (input stays bf16/f32 in HBM; only this tile becomes f32).
    tile = logits_ref[0].astype(jnp.float32)        # (B, ts, tv)
    labels = labels_ref[0]                          # (B, ts) int32

    # ---- online log-sum-exp over the vocab axis ----
    tile_max = jnp.max(tile, axis=-1)               # (B, ts)  XLU reduce
    m_new = jnp.maximum(m_acc[...], tile_max)
    alpha = jnp.exp(m_acc[...] - m_new)             # tiny (B, ts) rescale (EUP)
    l_acc[...] = alpha * l_acc[...] + jnp.sum(
        jnp.exp(tile - m_new[..., None]), axis=-1)
    m_acc[...] = m_new

    # ---- fused label gather on this vocab tile ----
    # Static tile-local iota; shift the tiny (B, ts) labels instead of the iota.
    vocab_iota = lax.broadcasted_iota(jnp.int32, tile.shape, 2)   # (B, ts, tv)
    hit = vocab_iota == (labels - v * tv)[..., None]
    g_acc[...] += jnp.sum(jnp.where(hit, tile, 0.0), axis=-1)

    # ---- finalize: write partial sum / count once per (head, token tile) ----
    @pl.when(v == n_v - 1)
    def _():
        valid = labels != _IGNORE                    # strict ignore_index match
        lse = m_acc[...] + jnp.log(l_acc[...])
        nll = jnp.where(valid, lse - g_acc[...], 0.0)
        sum_ref[...] = jnp.full(sum_ref.shape, jnp.sum(nll), dtype=jnp.float32)
        cnt_ref[...] = jnp.full(cnt_ref.shape,
                                jnp.sum(valid.astype(jnp.float32)),
                                dtype=jnp.float32)


def _pick_tile(dim, target, quantum=128):
    """Largest divisor of `dim` that is a multiple of `quantum` and <= target.

    Falls back to the full dim (always a legal block size), so there is never
    a padded partial tile to mask.
    """
    target = max(target, quantum)
    if dim % quantum != 0 or dim <= target:
        return dim
    best = quantum
    t = quantum
    while t <= target:
        if dim % t == 0:
            best = t
        t += quantum
    return best


def medusa_cross_entropy_loss(logits, labels, loss_on_original=False,
                              vocab_tile=None, tokens_target=None):
    """logits: (H, B, S, V) any float dtype; labels: (B, S) int.

    Returns (H,) float32 per-head mean cross-entropy losses
    (same stacking order as the PyTorch module).
    """
    H, B, S, V = logits.shape
    shift_idx = 0 if loss_on_original else 1

    # Per-output-head shift amounts (mirrors the PyTorch loop).
    if loss_on_original:
        shifts = [0] + [shift_idx + i for i in range(1, H)]
    else:
        shifts = [shift_idx + i for i in range(H)]

    # TODO(synk): the PyTorch loop breaks early on NaN loss (seq_len <= shift),
    # which yields a dynamic-length output; not expressible with a static
    # kernel output -- such heads come back as NaN entries here instead.
    shifted = []
    for s in shifts:
        if s == 0:
            shifted.append(labels.astype(jnp.int32))
        else:
            sl = jnp.pad(labels[:, s:], ((0, 0), (0, s)),
                         constant_values=_IGNORE)
            shifted.append(sl.astype(jnp.int32))
    shifted_labels = jnp.stack(shifted, axis=0)      # (H, B, S) int32 -- tiny

    # Tile sizes: multiples of 128 (lane-dense, satisfies the (8,128) rule) or
    # the full dim.  Token tile spans the whole batch, so scale by B.
    if tokens_target is None:
        tokens_target = 512
    ts = _pick_tile(S, max(128, (tokens_target // max(B, 1)) // 128 * 128))

    if vocab_tile is None:
        # Size the vocab tile so one native-dtype logits block is ~4 MiB
        # (double-buffered -> ~8 MiB, plus one f32 cast temp).
        itemsize = jnp.dtype(logits.dtype).itemsize
        budget = 4 << 20
        vocab_tile = max(512, (budget // max(1, B * ts * itemsize)) // 128 * 128)
    tv = _pick_tile(V, vocab_tile)

    n_t = S // ts
    n_v = V // tv

    out_sum, out_cnt = pl.pallas_call(
        _medusa_ce_kernel,
        out_shape=(jax.ShapeDtypeStruct((H, n_t, 8, 128), jnp.float32),
                   jax.ShapeDtypeStruct((H, n_t, 8, 128), jnp.float32)),
        grid_spec=pltpu.PrefetchScalarGridSpec(
            num_scalar_prefetch=0,
            grid=(H, n_t, n_v),                       # vocab (reduction) last
            in_specs=[
                # Native-dtype logits tile; cast per tile inside the kernel.
                pl.BlockSpec((1, B, ts, tv), lambda h, t, v: (h, 0, t, v)),
                pl.BlockSpec((1, B, ts), lambda h, t, v: (h, 0, t)),
            ],
            out_specs=[
                pl.BlockSpec((1, 1, 8, 128), lambda h, t, v: (h, t, 0, 0)),
                pl.BlockSpec((1, 1, 8, 128), lambda h, t, v: (h, t, 0, 0)),
            ],
            scratch_shapes=[pltpu.VMEM((B, ts), jnp.float32)] * 3,
        ),
        compiler_params=pltpu.CompilerParams(
            dimension_semantics=("parallel", "parallel", "arbitrary")),
    )(logits, shifted_labels)                        # no host-side f32 cast

    sums = jnp.sum(out_sum[:, :, 0, 0], axis=1)      # (H,)
    cnts = jnp.sum(out_cnt[:, :, 0, 0], axis=1)      # (H,)
    return sums / cnts


def _reference(logits, labels, loss_on_original=False):
    """Pure-JAX reference matching the PyTorch module (no early-break cases)."""
    H = logits.shape[0]
    shift_idx = 0 if loss_on_original else 1
    losses = []

    def ce(lg, lb):
        lg = lg.reshape(-1, lg.shape[-1]).astype(jnp.float32)
        lb = lb.reshape(-1)
        logp = jax.nn.log_softmax(lg, axis=-1)
        nll = -jnp.take_along_axis(logp, lb[:, None], axis=-1)[:, 0]
        return jnp.mean(nll)

    if loss_on_original:
        losses.append(ce(logits[0], labels))
        start = 1
    else:
        start = 0
    for i in range(start, H):
        s = shift_idx + i
        losses.append(ce(logits[i, :, :-s], labels[:, s:]))
    return jnp.stack(losses)


if __name__ == "__main__":
    key = jax.random.PRNGKey(0)
    H, B, S, V = 3, 2, 256, 512
    k1, k2 = jax.random.split(key)
    logits = jax.random.normal(k1, (H, B, S, V), dtype=jnp.float32)
    labels = jax.random.randint(k2, (B, S), 0, V, dtype=jnp.int32)

    # Small tiles so the test exercises multi-tile token/vocab streaming
    # (grid = (3, 2, 2)) and the online-LSE accumulation path.
    loss = medusa_cross_entropy_loss(logits, labels, loss_on_original=False,
                                     vocab_tile=256, tokens_target=256)
    loss = jax.block_until_ready(loss)
    ref = _reference(logits, labels, loss_on_original=False)
    assert jnp.allclose(loss, ref, atol=1e-4, rtol=1e-4), (loss, ref)

    # Default (adaptive) tiling path: single vocab tile at this small shape.
    loss_d = medusa_cross_entropy_loss(logits, labels, loss_on_original=False)
    loss_d = jax.block_until_ready(loss_d)
    assert jnp.allclose(loss_d, ref, atol=1e-4, rtol=1e-4), (loss_d, ref)

    # Native-bf16 logits path: no host-side f32 copy, per-tile cast in-kernel.
    logits_bf16 = logits.astype(jnp.bfloat16)
    loss_bf = medusa_cross_entropy_loss(logits_bf16, labels,
                                        loss_on_original=False,
                                        vocab_tile=256, tokens_target=256)
    loss_bf = jax.block_until_ready(loss_bf)
    ref_bf = _reference(logits_bf16, labels, loss_on_original=False)
    assert jnp.allclose(loss_bf, ref_bf, atol=2e-3, rtol=2e-3), (loss_bf, ref_bf)

    # loss_on_original=True path.
    loss_o = medusa_cross_entropy_loss(logits, labels, loss_on_original=True,
                                       vocab_tile=256, tokens_target=256)
    loss_o = jax.block_until_ready(loss_o)
    ref_o = _reference(logits, labels, loss_on_original=True)
    assert jnp.allclose(loss_o, ref_o, atol=1e-4, rtol=1e-4), (loss_o, ref_o)

    print("KERNEL_OK")
</pallas_src>

<mosaic_0001>
module attributes {stable_mosaic.version = 11 : i64} {
  func.func @_medusa_ce_kernel(%arg0: i32, %arg1: i32, %arg2: i32, %arg3: memref<1x2x128x256xf32, #tpu.memory_space<vmem>>, %arg4: memref<1x2x128xi32, #tpu.memory_space<vmem>>, %arg5: memref<1x1x8x128xf32, #tpu.memory_space<vmem>>, %arg6: memref<1x1x8x128xf32, #tpu.memory_space<vmem>>, %arg7: memref<2x128xf32, #tpu.memory_space<vmem>>, %arg8: memref<2x128xf32, #tpu.memory_space<vmem>>, %arg9: memref<2x128xf32, #tpu.memory_space<vmem>>) attributes {dimension_semantics = [#tpu.dimension_semantics<parallel>, #tpu.dimension_semantics<parallel>, #tpu.dimension_semantics<arbitrary>], iteration_bounds = array<i64: 3, 2, 2>, scalar_prefetch = 0 : i64, scratch_operands = 3 : i64, tpu.core_type = #tpu.core_type<tc>, window_params = [{transform_indices = @transform_0, window_bounds = array<i64: 1, 2, 128, 256>}, {transform_indices = @transform_1, window_bounds = array<i64: 1, 2, 128>}, {transform_indices = @transform_2, window_bounds = array<i64: 1, 1, 8, 128>}, {transform_indices = @transform_3, window_bounds = array<i64: 1, 1, 8, 128>}]} {
    %c0_i32 = arith.constant 0 : i32
    %0 = arith.cmpi eq, %arg2, %c0_i32 : i32
    %1 = arith.extui %0 : i1 to i32
    %c0_i32_0 = arith.constant 0 : i32
    %2 = arith.cmpi ne, %1, %c0_i32_0 : i32
    scf.if %2 {
      %cst_25 = arith.constant 0xFF800000 : f32
      %39 = vector.broadcast %cst_25 : f32 to vector<2x128xf32>
      %c0_26 = arith.constant 0 : index
      %c0_27 = arith.constant 0 : index
      %40 = vector.load %arg7[%c0_26, %c0_27] : memref<2x128xf32, #tpu.memory_space<vmem>>, vector<2x128xf32>
      tpu.vector_store %arg7[%c0_26, %c0_27], %39 {strides = array<i32>} : memref<2x128xf32, #tpu.memory_space<vmem>>, vector<2x128xf32>,
      %cst_28 = arith.constant 0.000000e+00 : f32
      %41 = vector.broadcast %cst_28 : f32 to vector<2x128xf32>
      %c0_29 = arith.constant 0 : index
      %c0_30 = arith.constant 0 : index
      %42 = vector.load %arg8[%c0_29, %c0_30] : memref<2x128xf32, #tpu.memory_space<vmem>>, vector<2x128xf32>
      tpu.vector_store %arg8[%c0_29, %c0_30], %41 {strides = array<i32>} : memref<2x128xf32, #tpu.memory_space<vmem>>, vector<2x128xf32>,
      %cst_31 = arith.constant 0.000000e+00 : f32
      %43 = vector.broadcast %cst_31 : f32 to vector<2x128xf32>
      %c0_32 = arith.constant 0 : index
      %c0_33 = arith.constant 0 : index
      %44 = vector.load %arg9[%c0_32, %c0_33] : memref<2x128xf32, #tpu.memory_space<vmem>>, vector<2x128xf32>
      tpu.vector_store %arg9[%c0_32, %c0_33], %43 {strides = array<i32>} : memref<2x128xf32, #tpu.memory_space<vmem>>, vector<2x128xf32>,
    } else {
    }
    %c0 = arith.constant 0 : index
    %c0_1 = arith.constant 0 : index
    %c0_2 = arith.constant 0 : index
    %c0_3 = arith.constant 0 : index
    %3 = vector.load %arg3[%c0, %c0_1, %c0_2, %c0_3] : memref<1x2x128x256xf32, #tpu.memory_space<vmem>>, vector<1x2x128x256xf32>
    %4 = vector.shape_cast %3 : vector<1x2x128x256xf32> to vector<2x128x256xf32>
    %c0_4 = arith.constant 0 : index
    %c0_5 = arith.constant 0 : index
    %c0_6 = arith.constant 0 : index
    %5 = vector.load %arg4[%c0_4, %c0_5, %c0_6] : memref<1x2x128xi32, #tpu.memory_space<vmem>>, vector<1x2x128xi32>
    %6 = vector.shape_cast %5 : vector<1x2x128xi32> to vector<2x128xi32>
    %cst = arith.constant dense<0xFF800000> : vector<2x128xf32>
    %7 = vector.multi_reduction <maximumf>, %4, %cst [2] : vector<2x128x256xf32> to vector<2x128xf32>
    %c0_7 = arith.constant 0 : index
    %c0_8 = arith.constant 0 : index
    %8 = vector.load %arg7[%c0_7, %c0_8] : memref<2x128xf32, #tpu.memory_space<vmem>>, vector<2x128xf32>
    %9 = arith.maximumf %8, %7 : vector<2x128xf32>
    %c0_9 = arith.constant 0 : index
    %c0_10 = arith.constant 0 : index
    %10 = vector.load %arg7[%c0_9, %c0_10] : memref<2x128xf32, #tpu.memory_space<vmem>>, vector<2x128xf32>
    %11 = arith.subf %10, %9 : vector<2x128xf32>
    %12 = math.exp %11 : vector<2x128xf32>
    %c0_11 = arith.constant 0 : index
    %c0_12 = arith.constant 0 : index
    %13 = vector.load %arg8[%c0_11, %c0_12] : memref<2x128xf32, #tpu.memory_space<vmem>>, vector<2x128xf32>
    %14 = arith.mulf %12, %13 : vector<2x128xf32>
    %15 = vector.shape_cast %9 : vector<2x128xf32> to vector<2x128x1xf32>
    %16 = vector.broadcast %15 : vector<2x128x1xf32> to vector<2x128x256xf32>
    %17 = arith.subf %4, %16 : vector<2x128x256xf32>
    %18 = math.exp %17 : vector<2x128x256xf32>
    %cst_13 = arith.constant dense<0.000000e+00> : vector<2x128xf32>
    %19 = vector.multi_reduction <add>, %18, %cst_13 [2] : vector<2x128x256xf32> to vector<2x128xf32>
    %20 = arith.addf %14, %19 : vector<2x128xf32>
    %c0_14 = arith.constant 0 : index
    %c0_15 = arith.constant 0 : index
    %21 = vector.load %arg8[%c0_14, %c0_15] : memref<2x128xf32, #tpu.memory_space<vmem>>, vector<2x128xf32>
    tpu.vector_store %arg8[%c0_14, %c0_15], %20 {strides = array<i32>} : memref<2x128xf32, #tpu.memory_space<vmem>>, vector<2x128xf32>,
    %c0_16 = arith.constant 0 : index
    %c0_17 = arith.constant 0 : index
    %22 = vector.load %arg7[%c0_16, %c0_17] : memref<2x128xf32, #tpu.memory_space<vmem>>, vector<2x128xf32>
    tpu.vector_store %arg7[%c0_16, %c0_17], %9 {strides = array<i32>} : memref<2x128xf32, #tpu.memory_space<vmem>>, vector<2x128xf32>,
    %23 = tpu.iota {dimensions = array<i32: 2>} : vector<2x128x256xi32>
    %c256_i32 = arith.constant 256 : i32
    %24 = arith.muli %arg2, %c256_i32 : i32
    %25 = vector.broadcast %24 : i32 to vector<2x128xi32>
    %26 = arith.subi %6, %25 : vector<2x128xi32>
    %27 = vector.shape_cast %26 : vector<2x128xi32> to vector<2x128x1xi32>
    %28 = vector.broadcast %27 : vector<2x128x1xi32> to vector<2x128x256xi32>
    %29 = arith.cmpi eq, %23, %28 : vector<2x128x256xi32>
    %c0_18 = arith.constant 0 : index
    %c0_19 = arith.constant 0 : index
    %30 = vector.load %arg9[%c0_18, %c0_19] : memref<2x128xf32, #tpu.memory_space<vmem>>, vector<2x128xf32>
    %cst_20 = arith.constant 0.000000e+00 : f32
    %31 = vector.broadcast %cst_20 : f32 to vector<2x128x256xf32>
    %32 = arith.select %29, %4, %31 : vector<2x128x256xi1>, vector<2x128x256xf32>
    %cst_21 = arith.constant dense<0.000000e+00> : vector<2x128xf32>
    %33 = vector.multi_reduction <add>, %32, %cst_21 [2] : vector<2x128x256xf32> to vector<2x128xf32>
    %34 = arith.addf %30, %33 : vector<2x128xf32>
    %c0_22 = arith.constant 0 : index
    %c0_23 = arith.constant 0 : index
    %35 = vector.load %arg9[%c0_22, %c0_23] : memref<2x128xf32, #tpu.memory_space<vmem>>, vector<2x128xf32>
    tpu.vector_store %arg9[%c0_22, %c0_23], %34 {strides = array<i32>} : memref<2x128xf32, #tpu.memory_space<vmem>>, vector<2x128xf32>,
    %c1_i32 = arith.constant 1 : i32
    %36 = arith.cmpi eq, %arg2, %c1_i32 : i32
    %37 = arith.extui %36 : i1 to i32
    %c0_i32_24 = arith.constant 0 : i32
    %38 = arith.cmpi ne, %37, %c0_i32_24 : i32
    scf.if %38 {
      %c-100_i32 = arith.constant -100 : i32
      %39 = vector.broadcast %c-100_i32 : i32 to vector<2x128xi32>
      %40 = arith.cmpi ne, %6, %39 : vector<2x128xi32>
      %c0_25 = arith.constant 0 : index
      %c0_26 = arith.constant 0 : index
      %41 = vector.load %arg7[%c0_25, %c0_26] : memref<2x128xf32, #tpu.memory_space<vmem>>, vector<2x128xf32>
      %c0_27 = arith.constant 0 : index
      %c0_28 = arith.constant 0 : index
      %42 = vector.load %arg8[%c0_27, %c0_28] : memref<2x128xf32, #tpu.memory_space<vmem>>, vector<2x128xf32>
      %43 = math.log %42 : vector<2x128xf32>
      %44 = arith.addf %41, %43 : vector<2x128xf32>
      %c0_29 = arith.constant 0 : index
      %c0_30 = arith.constant 0 : index
      %45 = vector.load %arg9[%c0_29, %c0_30] : memref<2x128xf32, #tpu.memory_space<vmem>>, vector<2x128xf32>
      %46 = arith.subf %44, %45 : vector<2x128xf32>
      %cst_31 = arith.constant 0.000000e+00 : f32
      %47 = vector.broadcast %cst_31 : f32 to vector<2x128xf32>
      %48 = arith.select %40, %46, %47 : vector<2x128xi1>, vector<2x128xf32>
      %49 = vector.shape_cast %48 : vector<2x128xf32> to vector<1x2x128xf32>
      %cst_32 = arith.constant dense<0.000000e+00> : vector<1xf32>
      %50 = vector.multi_reduction <add>, %49, %cst_32 [1, 2] : vector<1x2x128xf32> to vector<1xf32>
      %51 = vector.shape_cast %50 : vector<1xf32> to vector<1x1x1xf32>
      %52 = vector.extract %51[0, 0, 0] : f32 from vector<1x1x1xf32>
      %53 = vector.broadcast %52 : f32 to vector<1x1x8x128xf32>
      %c0_33 = arith.constant 0 : index
      %c0_34 = arith.constant 0 : index
      %c0_35 = arith.constant 0 : index
      %c0_36 = arith.constant 0 : index
      %54 = vector.load %arg5[%c0_33, %c0_34, %c0_35, %c0_36] : memref<1x1x8x128xf32, #tpu.memory_space<vmem>>, vector<1x1x8x128xf32>
      tpu.vector_store %arg5[%c0_33, %c0_34, %c0_35, %c0_36], %53 {strides = array<i32>} : memref<1x1x8x128xf32, #tpu.memory_space<vmem>>, vector<1x1x8x128xf32>,
      %55 = arith.extui %40 : vector<2x128xi1> to vector<2x128xi32>
      %56 = arith.sitofp %55 : vector<2x128xi32> to vector<2x128xf32>
      %57 = vector.shape_cast %56 : vector<2x128xf32> to vector<1x2x128xf32>
      %cst_37 = arith.constant dense<0.000000e+00> : vector<1xf32>
      %58 = vector.multi_reduction <add>, %57, %cst_37 [1, 2] : vector<1x2x128xf32> to vector<1xf32>
      %59 = vector.shape_cast %58 : vector<1xf32> to vector<1x1x1xf32>
      %60 = vector.extract %59[0, 0, 0] : f32 from vector<1x1x1xf32>
      %61 = vector.broadcast %60 : f32 to vector<1x1x8x128xf32>
      %c0_38 = arith.constant 0 : index
      %c0_39 = arith.constant 0 : index
      %c0_40 = arith.constant 0 : index
      %c0_41 = arith.constant 0 : index
      %62 = vector.load %arg6[%c0_38, %c0_39, %c0_40, %c0_41] : memref<1x1x8x128xf32, #tpu.memory_space<vmem>>, vector<1x1x8x128xf32>
      tpu.vector_store %arg6[%c0_38, %c0_39, %c0_40, %c0_41], %61 {strides = array<i32>} : memref<1x1x8x128xf32, #tpu.memory_space<vmem>>, vector<1x1x8x128xf32>,
    } else {
    }
    return
  }
  func.func @transform_0(%arg0: i32, %arg1: i32, %arg2: i32) -> (i32, i32, i32, i32) {
    %c0_i32 = arith.constant 0 : i32
    %c0_i32_0 = arith.constant 0 : i32
    return %arg0, %c0_i32, %arg1, %arg2 : i32, i32, i32, i32
  }
  func.func @transform_1(%arg0: i32, %arg1: i32, %arg2: i32) -> (i32, i32, i32) {
    %c0_i32 = arith.constant 0 : i32
    %c0_i32_0 = arith.constant 0 : i32
    return %arg0, %c0_i32, %arg1 : i32, i32, i32
  }
  func.func @transform_2(%arg0: i32, %arg1: i32, %arg2: i32) -> (i32, i32, i32, i32) {
    %c0_i32 = arith.constant 0 : i32
    %c0_i32_0 = arith.constant 0 : i32
    %c0_i32_1 = arith.constant 0 : i32
    return %arg0, %arg1, %c0_i32, %c0_i32_0 : i32, i32, i32, i32
  }
  func.func @transform_3(%arg0: i32, %arg1: i32, %arg2: i32) -> (i32, i32, i32, i32) {
    %c0_i32 = arith.constant 0 : i32
    %c0_i32_0 = arith.constant 0 : i32
    %c0_i32_1 = arith.constant 0 : i32
    return %arg0, %arg1, %c0_i32, %c0_i32_0 : i32, i32, i32, i32
  }
}

</mosaic_0001>

<llo_original>
// kernel: tpu_custom_call.1
$region0: #{tpu_custom_call.1}
  #allocation0 [shape = 'u32[]', space=smem, size = 0x4, offset = 0x4, fixed_abs, tag = 'smem constant byte address 0x4 - core index']
  #allocation1 [shape = 'u32[144,128]{1,0:T(1,128)}', space=vmem, size = 0x12000, scoped, tag = 'internal scratch']
  #allocation2 [shape = 'f32[2,128]{1,0:T(2,128)}', space=vmem, size = 0x400, scoped, tag = 'scratch operand']
  #allocation3 [shape = 'f32[2,128]{1,0:T(2,128)}', space=vmem, size = 0x400, scoped, tag = 'scratch operand']
  #allocation4 [shape = 'f32[2,128]{1,0:T(2,128)}', space=vmem, size = 0x400, scoped, tag = 'scratch operand']
  #allocation13 [shape = 's32[]', space=sflag, size = 0x4, offset = 0, fixed_abs, tag = 'sflag constant byte address 0x0 - dummy sync flag']
  %s0 = inlined_call_operand.hbm [shape: f32[3,2,256,512], index: 0, kind: input, shape index: {}]
  %s1 = inlined_call_operand.hbm [shape: s32[3,2,256], index: 1, kind: input, shape index: {}]
  %s2 = inlined_call_operand.hbm [shape: f32[3,2,8,128], index: 2, kind: output, shape index: {0}]
  %s3 = inlined_call_operand.hbm [shape: f32[3,2,8,128], index: 3, kind: output, shape index: {1}]
  %4 = xla_tuple %s2, %s3
  %s5 = sld [smem:[#allocation0]]
  $region65: #{tpu_custom_call.1} parent=0
    _
  %s7 = ssub.s32 1, %s5
  %s8 = scalar_select 0, %s7, %s5
  $region1: #{tpu_custom_call.1} parent=0
    #allocation5 [shape = 'u8[524288]{0}', space=vmem, size = 0x80000, scoped, tag = 'input window, operand 0']
    #allocation6 [shape = 's32[2]{0}', space=sflag, size = 0x8, scoped, tag = 'scoped memory for tpu_custom_call.1']
    #allocation7 [shape = 's32[2]{0}', space=sflag, size = 0x8, scoped, tag = 'scoped memory for tpu_custom_call.1']
    #allocation8 [shape = 'u8[2048]{0}', space=vmem, size = 0x800, scoped, tag = 'input window, operand 1']
    #allocation9 [shape = 's32[2]{0}', space=sflag, size = 0x8, scoped, tag = 'scoped memory for tpu_custom_call.1']
    #allocation10 [shape = 'u8[8192]{0}', space=vmem, size = 0x2000, scoped, tag = 'output window, operand 0']
    #allocation11 [shape = 'u8[8192]{0}', space=vmem, size = 0x2000, scoped, tag = 'output window, operand 1']
    #allocation12 [shape = 's32[2]{0}', space=sflag, size = 0x8, scoped, tag = 'scoped memory for tpu_custom_call.1']
    %9 = vsyncpa [#allocation6], 0
    %s10 = scalar_lea.sflag [#allocation6], 1
    %11 = vsyncpa %s10, 0
    %12 = vsyncpa [#allocation9], 0
    %s13 = scalar_lea.sflag [#allocation9], 1
    %14 = vsyncpa %s13, 0
    %15 = vsyncpa [#allocation7], 0
    %s16 = scalar_lea.sflag [#allocation7], 1
    %17 = vsyncpa %s16, 0
    %18 = vsyncpa [#allocation12], 0
    %s19 = scalar_lea.sflag [#allocation12], 1
    %20 = vsyncpa %s19, 0
    loop: start=0, step=1, limit=14
    $region2: #{tpu_custom_call.1} parent=1 // loop_pre_header
      _
    $region3: #{tpu_custom_call.1} parent=1 // loop_header
      %s22 = sphi 0, %s26
      %p23 = scmp.ge.s32.totalorder %s22, 14
      %s29 = sphi 0, %s48
      %s30 = sphi 0, %s44
      %s31 = sphi 0, %s40
      %s32 = sphi 0, %s29
      %s33 = sphi 0, %s30
      %s34 = sphi 0, %s31
      %s35 = sphi 0, %s32
      %s36 = sphi 0, %s33
      %s37 = sphi 0, %s34
      %s55 = sphi 0, %s57
      %s58 = sphi 0, %s55
      %s59 = sphi 0, %s58
      %s75 = sphi 0, %s59
      %s83 = sphi 0, %s85
      %s86 = sphi 0, %s83
      %s87 = sphi 0, %s86
      %s103 = sphi 0, %s87
      %s111 = sphi 0, %s113
      %s114 = sphi 0, %s111
      %s115 = sphi 0, %s114
      %s131 = sphi 0, %s115
      %s139 = sphi 0, %s141
      %s142 = sphi 0, %s139
      %s143 = sphi 0, %s142
      %s159 = sphi 0, %s143
    $region4: #{tpu_custom_call.1} parent=1 // loop_header_branch
      %25 = sbr.rel (%p23) target = $region8
    $region5: #{tpu_custom_call.1} parent=1 // loop_body
      %s27 = ssub.s32 %s22, 1
      %s28 = ssub.s32 %s22, 2
      %s38 = sadd.s32 1, %s31
      %p39 = scmp.ge.s32.totalorder %s38, 2
      %s40 = scalar_select %p39, 0, %s38
      %s41 = sadd.s32 1, %s30
      %s42 = scalar_select %p39, %s41, %s30
      %p43 = scmp.ge.s32.totalorder %s42, 2
      %s44 = scalar_select %p43, 0, %s42
      %s45 = sadd.s32 1, %s29
      %s46 = scalar_select %p43, %s45, %s29
      %p47 = scmp.ge.s32.totalorder %s46, 3
      %s48 = scalar_select %p47, 0, %s46
      %s49 = ssub.s32 %s29, %s48
      %s50 = ssub.s32 %s30, %s44
      %s51 = sor.u32 %s49, %s50
      %s52 = ssub.s32 %s31, %s40
      %s53 = sor.u32 %s51, %s52
      %p54 = scmp.eq.s32.totalorder %s53, 0
      %s56 = sadd.s32 %s55, 1
      %s57 = scalar_select %p54, %s55, %s56
      %p60 = pneg %p54
      %p61 = scmp.eq.s32.totalorder %s22, 11
      %p62 = por %p60, %p61
      %p63 = scmp.ne.s32.totalorder %s55, %s58
      %p64 = scmp.eq.s32.totalorder %s22, 0
      %p65 = por %p63, %p64
      %p66 = scmp.ne.s32.totalorder %s55, %s58
      %p67 = scmp.eq.s32.totalorder %s27, 11
      %p68 = por %p66, %p67
      %p69 = scmp.ne.s32.totalorder %s58, %s59
      %p70 = scmp.eq.s32.totalorder %s27, 0
      %p71 = por %p69, %p70
      %p72 = scmp.ne.s32.totalorder %s58, %s59
      %p73 = scmp.eq.s32.totalorder %s28, 11
      %p74 = por %p72, %p73
      %p76 = scmp.ne.s32.totalorder %s59, %s75
      %p77 = scmp.eq.s32.totalorder %s28, 0
      %p78 = por %p76, %p77
      %s79 = ssub.s32 %s29, %s48
      %s80 = ssub.s32 %s30, %s44
      %s81 = sor.u32 %s79, %s80
      %p82 = scmp.eq.s32.totalorder %s81, 0
      %s84 = sadd.s32 %s83, 1
      %s85 = scalar_select %p82, %s83, %s84
      %p88 = pneg %p82
      %p89 = scmp.eq.s32.totalorder %s22, 11
      %p90 = por %p88, %p89
      %p91 = scmp.ne.s32.totalorder %s83, %s86
      %p92 = scmp.eq.s32.totalorder %s22, 0
      %p93 = por %p91, %p92
      %p94 = scmp.ne.s32.totalorder %s83, %s86
      %p95 = scmp.eq.s32.totalorder %s27, 11
      %p96 = por %p94, %p95
      %p97 = scmp.ne.s32.totalorder %s86, %s87
      %p98 = scmp.eq.s32.totalorder %s27, 0
      %p99 = por %p97, %p98
      %p100 = scmp.ne.s32.totalorder %s86, %s87
      %p101 = scmp.eq.s32.totalorder %s28, 11
      %p102 = por %p100, %p101
      %p104 = scmp.ne.s32.totalorder %s87, %s103
      %p105 = scmp.eq.s32.totalorder %s28, 0
      %p106 = por %p104, %p105
      %s107 = ssub.s32 %s29, %s48
      %s108 = ssub.s32 %s30, %s44
      %s109 = sor.u32 %s107, %s108
      %p110 = scmp.eq.s32.totalorder %s109, 0
      %s112 = sadd.s32 %s111, 1
      %s113 = scalar_select %p110, %s111, %s112
      %p116 = pneg %p110
      %p117 = scmp.eq.s32.totalorder %s22, 11
      %p118 = por %p116, %p117
      %p119 = scmp.ne.s32.totalorder %s111, %s114
      %p120 = scmp.eq.s32.totalorder %s22, 0
      %p121 = por %p119, %p120
      %p122 = scmp.ne.s32.totalorder %s111, %s114
      %p123 = scmp.eq.s32.totalorder %s27, 11
      %p124 = por %p122, %p123
      %p125 = scmp.ne.s32.totalorder %s114, %s115
      %p126 = scmp.eq.s32.totalorder %s27, 0
      %p127 = por %p125, %p126
      %p128 = scmp.ne.s32.totalorder %s114, %s115
      %p129 = scmp.eq.s32.totalorder %s28, 11
      %p130 = por %p128, %p129
      %p132 = scmp.ne.s32.totalorder %s115, %s131
      %p133 = scmp.eq.s32.totalorder %s28, 0
      %p134 = por %p132, %p133
      %s135 = ssub.s32 %s29, %s48
      %s136 = ssub.s32 %s30, %s44
      %s137 = sor.u32 %s135, %s136
      %p138 = scmp.eq.s32.totalorder %s137, 0
      %s140 = sadd.s32 %s139, 1
      %s141 = scalar_select %p138, %s139, %s140
      %p144 = pneg %p138
      %p145 = scmp.eq.s32.totalorder %s22, 11
      %p146 = por %p144, %p145
      %p147 = scmp.ne.s32.totalorder %s139, %s142
      %p148 = scmp.eq.s32.totalorder %s22, 0
      %p149 = por %p147, %p148
      %p150 = scmp.ne.s32.totalorder %s139, %s142
      %p151 = scmp.eq.s32.totalorder %s27, 11
      %p152 = por %p150, %p151
      %p153 = scmp.ne.s32.totalorder %s142, %s143
      %p154 = scmp.eq.s32.totalorder %s27, 0
      %p155 = por %p153, %p154
      %p156 = scmp.ne.s32.totalorder %s142, %s143
      %p157 = scmp.eq.s32.totalorder %s28, 11
      %p158 = por %p156, %p157
      %p160 = scmp.ne.s32.totalorder %s143, %s159
      %p161 = scmp.eq.s32.totalorder %s28, 0
      %p162 = por %p160, %p161
      %p163 = scmp.le.s32.totalorder 1, %s22
      %p164 = scmp.lt.s32.totalorder %s22, 13
      %p165 = pnand %p163, %p164
      %p166 = pneg %p165
      // Predicated region
      $region9: #{tpu_custom_call.1} parent=5 // pred_check
        _
      $region10: #{tpu_custom_call.1} parent=5 // pred_check_branch
        %168 = sbr.rel (%p165) target = $region12
      $region11: #{tpu_custom_call.1} parent=5 // pred_region
        %s169 = ssub.s32 %s22, 1
      $region12: #{tpu_custom_call.1} parent=5 // pred_fallthru
        _
      %p170 = scmp.lt.s32.totalorder %s22, 12
      // Predicated region
      $region13: #{tpu_custom_call.1} parent=5 // pred_check
        %p171 = pneg %p170
      $region14: #{tpu_custom_call.1} parent=5 // pred_check_branch
        %173 = sbr.rel (%p171) target = $region16
      $region15: #{tpu_custom_call.1} parent=5 // pred_region
        // Predicated region
        $region17: #{tpu_custom_call.1} parent=15 // pred_check
          %p174 = pneg %p65
        $region18: #{tpu_custom_call.1} parent=15 // pred_check_branch
          %176 = sbr.rel (%p174) target = $region20
        $region19: #{tpu_custom_call.1} parent=15 // pred_region
          #allocation14 [shape = 'u32[6]{0}', space=smem, size = 0x18, scoped, tag = 'DMA stride descriptor']
          %s177 = sand.u32 %s55, 1
          %s178 = scalar_lea.sflag [#allocation6], %s177
          %s179 = sand.u32 %s55, 1
          %s180 = smul.addr %s179, 512
          %s181 = scalar_lea.vmem [#allocation5], %s180
          %s182 = smul.u32 16, %s30
          %s183 = smul.u32 2, %s31
          %s185 = ssub.s32 8192, 8192
          %186 = vsyncadd %s178, %s185
          %s187 = smul.addr %s182, 4
          %s188 = sadd.s32 %s183, %s187
          %s189 = smul.addr %s29, 256
          %s190 = sadd.s32 %s188, %s189
          %s191 = smul.addr %s190, 128
          %s192 = scalar_lea.hbm %s0, %s191
          %s194 = sshll.u32 1, 14
          %s195 = sxor.u32 4294967295, %s194
          %s197 = sld [smem:[#allocation0]]
          %s198 = sadd.s32 2, %s197
          %s200 = sshll.u32 7, 26
          %s201 = sxor.u32 4294967295, %s200
          %s202 = sand.u32 0, %s201
          %s203 = sshll.u32 %s198, 26
          %s204 = sor.u32 %s202, %s203
          %s205 = sshll.u32 %s181, 4
          %s206 = int_to_ptr.vmem [resolvable:$true] %s205
          %212 = sst [smem:[#allocation14]] 16384
          %s213 = scalar_lea.smem [#allocation14], 1
          %214 = sst [smem:[%s213]] 4096
          %s215 = scalar_lea.smem [#allocation14], 2
          %216 = sst [smem:[%s215]] 16
          %s217 = scalar_lea.smem [#allocation14], 3
          %218 = sst [smem:[%s217]] 512
          %s219 = scalar_lea.smem [#allocation14], 4
          %220 = sst [smem:[%s219]] 256
          %s221 = scalar_lea.smem [#allocation14], 5
          %222 = sst [smem:[%s221]] 16
          %224 = dma.general %s192, 8192, %s206, %s178, 131072, [#allocation14], %s204, 0
        $region20: #{tpu_custom_call.1} parent=15 // pred_fallthru
          _
        // Predicated region
        $region21: #{tpu_custom_call.1} parent=15 // pred_check
          %p225 = pneg %p93
        $region22: #{tpu_custom_call.1} parent=15 // pred_check_branch
          %227 = sbr.rel (%p225) target = $region24
        $region23: #{tpu_custom_call.1} parent=15 // pred_region
          %s228 = sand.u32 %s83, 1
          %s229 = scalar_lea.sflag [#allocation9], %s228
          %s230 = sand.u32 %s83, 1
          %s231 = smul.addr %s230, 2
          %s232 = scalar_lea.vmem [#allocation8], %s231
          %s234 = ssub.s32 32, 32
          %235 = vsyncadd %s229, %s234
          %s236 = smul.addr %s29, 2
          %s237 = sadd.s32 %s30, %s236
          %s238 = smul.addr %s237, 32
          %s239 = scalar_lea.hbm %s1, %s238
          %s241 = sshll.u32 %s232, 4
          %s242 = int_to_ptr.vmem [resolvable:$true] %s241
          %244 = dma.hbm_to_vmem [thread:$0]  %s239, 32, %s242, %s229
        $region24: #{tpu_custom_call.1} parent=15 // pred_fallthru
          _
      $region16: #{tpu_custom_call.1} parent=5 // pred_fallthru
        _
      %p245 = scmp.le.s32.totalorder 1, %s22
      %p246 = scmp.lt.s32.totalorder %s22, 13
      %p247 = pnand %p245, %p246
      %p248 = pneg %p247
      // Predicated region
      $region25: #{tpu_custom_call.1} parent=5 // pred_check
        _
      $region26: #{tpu_custom_call.1} parent=5 // pred_check_branch
        %250 = sbr.rel (%p247) target = $region28
      $region27: #{tpu_custom_call.1} parent=5 // pred_region
        %s251 = ssub.s32 %s22, 1
        %s252 = sand.u32 %s58, 1
        %s253 = scalar_lea.sflag [#allocation6], %s252
        %s254 = sand.u32 %s58, 1
        %s255 = smul.addr %s254, 512
        %s256 = scalar_lea.vmem [#allocation5], %s255
        // Predicated region
        $region29: #{tpu_custom_call.1} parent=27 // pred_check
          %p257 = pneg %p71
        $region30: #{tpu_custom_call.1} parent=27 // pred_check_branch
          %259 = sbr.rel (%p257) target = $region32
        $region31: #{tpu_custom_call.1} parent=27 // pred_region
          %260 = dma.done %s253, 8192
        $region32: #{tpu_custom_call.1} parent=27 // pred_fallthru
          _
        %s261 = sand.u32 %s86, 1
        %s262 = scalar_lea.sflag [#allocation9], %s261
        %s263 = sand.u32 %s86, 1
        %s264 = smul.addr %s263, 2
        %s265 = scalar_lea.vmem [#allocation8], %s264
        // Predicated region
        $region33: #{tpu_custom_call.1} parent=27 // pred_check
          %p266 = pneg %p99
        $region34: #{tpu_custom_call.1} parent=27 // pred_check_branch
          %268 = sbr.rel (%p266) target = $region36
        $region35: #{tpu_custom_call.1} parent=27 // pred_region
          %269 = dma.done %s262, 32
        $region36: #{tpu_custom_call.1} parent=27 // pred_fallthru
          _
        %s270 = sand.u32 %s58, 1
        %s271 = scalar_lea.sflag [#allocation6], %s270
        %s272 = sand.u32 %s58, 1
        %s273 = smul.addr %s272, 512
        %s274 = scalar_lea.vmem [#allocation5], %s273
        %p275 = pneg %p71
        %p276 = pneg %p68
        %s277 = sand.u32 %s86, 1
        %s278 = scalar_lea.sflag [#allocation9], %s277
        %s279 = sand.u32 %s86, 1
        %s280 = smul.addr %s279, 2
        %s281 = scalar_lea.vmem [#allocation8], %s280
        %p282 = pneg %p99
        %p283 = pneg %p96
        %p284 = pneg %p127
        %p285 = pneg %p124
        %s286 = sand.u32 %s114, 1
        %s287 = scalar_lea.sflag [#allocation7], %s286
        %s288 = sand.u32 %s114, 1
        %s289 = smul.addr %s288, 8
        %s290 = scalar_lea.vmem [#allocation10], %s289
        %p291 = pneg %p155
        %p292 = pneg %p152
        %s293 = sand.u32 %s142, 1
        %s294 = scalar_lea.sflag [#allocation12], %s293
        %s295 = sand.u32 %s142, 1
        %s296 = smul.addr %s295, 8
        %s297 = scalar_lea.vmem [#allocation11], %s296
        %s298 = smul.u32 16, %s33
        %s299 = smul.u32 2, %s34
        %p300 = scmp.eq.s32.totalorder %s34, 0
        // Predicated region
        $region37: #{tpu_custom_call.1} parent=27 // pred_check
          %p301 = pneg %p300
        $region38: #{tpu_custom_call.1} parent=27 // pred_check_branch
          %303 = sbr.rel (%p301) target = $region40
        $region39: #{tpu_custom_call.1} parent=27 // pred_region
          %304 = vst [vmem:[#allocation2] sm:$0x3] -inf
          %305 = vst [vmem:[#allocation3] sm:$0x3] 0.0
          %306 = vst [vmem:[#allocation4] sm:$0x3] 0.0
        $region40: #{tpu_custom_call.1} parent=27 // pred_fallthru
          _
        %v307 = vld [vmem:[%s256] sm:$0xff]
        %v308 = vld [vmem:[%s256 + $0x8] sm:$0xff]
        %v309 = vld [vmem:[%s256 + $0x10] sm:$0xff]
        %v310 = vld [vmem:[%s256 + $0x18] sm:$0xff]
        %v311 = vld [vmem:[%s256 + $0x20] sm:$0xff]
        %v312 = vld [vmem:[%s256 + $0x28] sm:$0xff]
        %v313 = vld [vmem:[%s256 + $0x30] sm:$0xff]
        %v314 = vld [vmem:[%s256 + $0x38] sm:$0xff]
        %v315 = vld [vmem:[%s256 + $0x40] sm:$0xff]
        %v316 = vld [vmem:[%s256 + $0x48] sm:$0xff]
        %v317 = vld [vmem:[%s256 + $0x50] sm:$0xff]
        %v318 = vld [vmem:[%s256 + $0x58] sm:$0xff]
        %v319 = vld [vmem:[%s256 + $0x60] sm:$0xff]
        %v320 = vld [vmem:[%s256 + $0x68] sm:$0xff]
        %v321 = vld [vmem:[%s256 + $0x70] sm:$0xff]
        %v322 = vld [vmem:[%s256 + $0x78] sm:$0xff]
        %v323 = vld [vmem:[%s256 + $0x80] sm:$0xff]
        %v324 = vld [vmem:[%s256 + $0x88] sm:$0xff]
        %v325 = vld [vmem:[%s256 + $0x90] sm:$0xff]
        %v326 = vld [vmem:[%s256 + $0x98] sm:$0xff]
        %v327 = vld [vmem:[%s256 + $0xa0] sm:$0xff]
        %v328 = vld [vmem:[%s256 + $0xa8] sm:$0xff]
        %v329 = vld [vmem:[%s256 + $0xb0] sm:$0xff]
        %v330 = vld [vmem:[%s256 + $0xb8] sm:$0xff]
        %v331 = vld [vmem:[%s256 + $0xc0] sm:$0xff]
        %v332 = vld [vmem:[%s256 + $0xc8] sm:$0xff]
        %v333 = vld [vmem:[%s256 + $0xd0] sm:$0xff]
        %v334 = vld [vmem:[%s256 + $0xd8] sm:$0xff]
        %v335 = vld [vmem:[%s256 + $0xe0] sm:$0xff]
        %v336 = vld [vmem:[%s256 + $0xe8] sm:$0xff]
        %v337 = vld [vmem:[%s256 + $0xf0] sm:$0xff]
        %v338 = vld [vmem:[%s256 + $0xf8] sm:$0xff]
        %v339 = vld [vmem:[%s256 + $0x100] sm:$0xff]
        %v340 = vld [vmem:[%s256 + $0x108] sm:$0xff]
        %v341 = vld [vmem:[%s256 + $0x110] sm:$0xff]
        %v342 = vld [vmem:[%s256 + $0x118] sm:$0xff]
        %v343 = vld [vmem:[%s256 + $0x120] sm:$0xff]
        %v344 = vld [vmem:[%s256 + $0x128] sm:$0xff]
        %v345 = vld [vmem:[%s256 + $0x130] sm:$0xff]
        %v346 = vld [vmem:[%s256 + $0x138] sm:$0xff]
        %v347 = vld [vmem:[%s256 + $0x140] sm:$0xff]
        %v348 = vld [vmem:[%s256 + $0x148] sm:$0xff]
        %v349 = vld [vmem:[%s256 + $0x150] sm:$0xff]
        %v350 = vld [vmem:[%s256 + $0x158] sm:$0xff]
        %v351 = vld [vmem:[%s256 + $0x160] sm:$0xff]
        %v352 = vld [vmem:[%s256 + $0x168] sm:$0xff]
        %v353 = vld [vmem:[%s256 + $0x170] sm:$0xff]
        %v354 = vld [vmem:[%s256 + $0x178] sm:$0xff]
        %v355 = vld [vmem:[%s256 + $0x180] sm:$0xff]
        %v356 = vld [vmem:[%s256 + $0x188] sm:$0xff]
        %v357 = vld [vmem:[%s256 + $0x190] sm:$0xff]
        %v358 = vld [vmem:[%s256 + $0x198] sm:$0xff]
        %v359 = vld [vmem:[%s256 + $0x1a0] sm:$0xff]
        %v360 = vld [vmem:[%s256 + $0x1a8] sm:$0xff]
        %v361 = vld [vmem:[%s256 + $0x1b0] sm:$0xff]
        %v362 = vld [vmem:[%s256 + $0x1b8] sm:$0xff]
        %v363 = vld [vmem:[%s256 + $0x1c0] sm:$0xff]
        %v364 = vld [vmem:[%s256 + $0x1c8] sm:$0xff]
        %v365 = vld [vmem:[%s256 + $0x1d0] sm:$0xff]
        %v366 = vld [vmem:[%s256 + $0x1d8] sm:$0xff]
        %v367 = vld [vmem:[%s256 + $0x1e0] sm:$0xff]
        %v368 = vld [vmem:[%s256 + $0x1e8] sm:$0xff]
        %v369 = vld [vmem:[%s256 + $0x1f0] sm:$0xff]
        %v370 = vld [vmem:[%s256 + $0x1f8] sm:$0xff]
        %v371 = vld [vmem:[%s265] sm:$0x3]
        %v372 = vmax.f32 %v307, %v308
        %373 = vmax.xlane.f32.xlu0 %v372
        %v374 = vpop.xlane.xlu0 %373
        %v375 = vmax.f32 %v309, %v310
        %376 = vmax.xlane.f32.xlu0 %v375
        %v377 = vpop.xlane.xlu0 %376
        %v378 = vmax.f32 %v311, %v312
        %379 = vmax.xlane.f32.xlu0 %v378
        %v380 = vpop.xlane.xlu0 %379
        %v381 = vmax.f32 %v313, %v314
        %382 = vmax.xlane.f32.xlu0 %v381
        %v383 = vpop.xlane.xlu0 %382
        %v384 = vmax.f32 %v315, %v316
        %385 = vmax.xlane.f32.xlu0 %v384
        %v386 = vpop.xlane.xlu0 %385
        %v387 = vmax.f32 %v317, %v318
        %388 = vmax.xlane.f32.xlu0 %v387
        %v389 = vpop.xlane.xlu0 %388
        %v390 = vmax.f32 %v319, %v320
        %391 = vmax.xlane.f32.xlu0 %v390
        %v392 = vpop.xlane.xlu0 %391
        %v393 = vmax.f32 %v321, %v322
        %394 = vmax.xlane.f32.xlu0 %v393
        %v395 = vpop.xlane.xlu0 %394
        %v396 = vmax.f32 %v323, %v324
        %397 = vmax.xlane.f32.xlu0 %v396
        %v398 = vpop.xlane.xlu0 %397
        %v399 = vmax.f32 %v325, %v326
        %400 = vmax.xlane.f32.xlu0 %v399
        %v401 = vpop.xlane.xlu0 %400
        %v402 = vmax.f32 %v327, %v328
        %403 = vmax.xlane.f32.xlu0 %v402
        %v404 = vpop.xlane.xlu0 %403
        %v405 = vmax.f32 %v329, %v330
        %406 = vmax.xlane.f32.xlu0 %v405
        %v407 = vpop.xlane.xlu0 %406
        %v408 = vmax.f32 %v331, %v332
        %409 = vmax.xlane.f32.xlu0 %v408
        %v410 = vpop.xlane.xlu0 %409
        %v411 = vmax.f32 %v333, %v334
        %412 = vmax.xlane.f32.xlu0 %v411
        %v413 = vpop.xlane.xlu0 %412
        %v414 = vmax.f32 %v335, %v336
        %415 = vmax.xlane.f32.xlu0 %v414
        %v416 = vpop.xlane.xlu0 %415
        %v417 = vmax.f32 %v337, %v338
        %418 = vmax.xlane.f32.xlu0 %v417
        %v419 = vpop.xlane.xlu0 %418
        %v420 = vmax.f32 %v339, %v340
        %421 = vmax.xlane.f32.xlu0 %v420
        %v422 = vpop.xlane.xlu0 %421
        %v423 = vmax.f32 %v341, %v342
        %424 = vmax.xlane.f32.xlu0 %v423
        %v425 = vpop.xlane.xlu0 %424
        %v426 = vmax.f32 %v343, %v344
        %427 = vmax.xlane.f32.xlu0 %v426
        %v428 = vpop.xlane.xlu0 %427
        %v429 = vmax.f32 %v345, %v346
        %430 = vmax.xlane.f32.xlu0 %v429
        %v431 = vpop.xlane.xlu0 %430
        %v432 = vmax.f32 %v347, %v348
        %433 = vmax.xlane.f32.xlu0 %v432
        %v434 = vpop.xlane.xlu0 %433
        %v435 = vmax.f32 %v349, %v350
        %436 = vmax.xlane.f32.xlu0 %v435
        %v437 = vpop.xlane.xlu0 %436
        %v438 = vmax.f32 %v351, %v352
        %439 = vmax.xlane.f32.xlu0 %v438
        %v440 = vpop.xlane.xlu0 %439
        %v441 = vmax.f32 %v353, %v354
        %442 = vmax.xlane.f32.xlu0 %v441
        %v443 = vpop.xlane.xlu0 %442
        %v444 = vmax.f32 %v355, %v356
        %445 = vmax.xlane.f32.xlu0 %v444
        %v446 = vpop.xlane.xlu0 %445
        %v447 = vmax.f32 %v357, %v358
        %448 = vmax.xlane.f32.xlu0 %v447
        %v449 = vpop.xlane.xlu0 %448
        %v450 = vmax.f32 %v359, %v360
        %451 = vmax.xlane.f32.xlu0 %v450
        %v452 = vpop.xlane.xlu0 %451
        %v453 = vmax.f32 %v361, %v362
        %454 = vmax.xlane.f32.xlu0 %v453
        %v455 = vpop.xlane.xlu0 %454
        %v456 = vmax.f32 %v363, %v364
        %457 = vmax.xlane.f32.xlu0 %v456
        %v458 = vpop.xlane.xlu0 %457
        %v459 = vmax.f32 %v365, %v366
        %460 = vmax.xlane.f32.xlu0 %v459
        %v461 = vpop.xlane.xlu0 %460
        %v462 = vmax.f32 %v367, %v368
        %463 = vmax.xlane.f32.xlu0 %v462
        %v464 = vpop.xlane.xlu0 %463
        %v465 = vmax.f32 %v369, %v370
        %466 = vmax.xlane.f32.xlu0 %v465
        %v467 = vpop.xlane.xlu0 %466
        %v468 = vld [vmem:[#allocation2] sm:$0x3]
        %v501 = vlaneseq
        %v502 = vand.u32 %v501, 127
        %v503 = vlaneseq
        %v504 = vshrl.u32 %v503, 7
        %v505 = vsub.s32 %v502, %v504
        %v506 = vrot.slane %v374, %v505
        %v507 = vadd.s32 %v502, 4294967288
        %v508 = vlaneseq
        %v509 = vshrl.u32 %v508, 7
        %v510 = vsub.s32 %v507, %v509
        %v511 = vrot.slane %v377, %v510
        %vm512 = vcmask 130112
        %v513 = vsel %vm512, %v511, %v506
        %v514 = vadd.s32 %v502, 4294967280
        %v515 = vlaneseq
        %v516 = vshrl.u32 %v515, 7
        %v517 = vsub.s32 %v514, %v516
        %v518 = vrot.slane %v380, %v517
        %vm519 = vcmask 195712
        %v520 = vsel %vm519, %v518, %v513
        %v521 = vadd.s32 %v502, 4294967272
        %v522 = vlaneseq
        %v523 = vshrl.u32 %v522, 7
        %v524 = vsub.s32 %v521, %v523
        %v525 = vrot.slane %v383, %v524
        %vm526 = vcmask 261312
        %v527 = vsel %vm526, %v525, %v520
        %v528 = vadd.s32 %v502, 4294967264
        %v529 = vlaneseq
        %v530 = vshrl.u32 %v529, 7
        %v531 = vsub.s32 %v528, %v530
        %v532 = vrot.slane %v386, %v531
        %vm533 = vcmask 326912
        %v534 = vsel %vm533, %v532, %v527
        %v535 = vadd.s32 %v502, 4294967256
        %v536 = vlaneseq
        %v537 = vshrl.u32 %v536, 7
        %v538 = vsub.s32 %v535, %v537
        %v539 = vrot.slane %v389, %v538
        %vm540 = vcmask 392512
        %v541 = vsel %vm540, %v539, %v534
        %v542 = vadd.s32 %v502, 4294967248
        %v543 = vlaneseq
        %v544 = vshrl.u32 %v543, 7
        %v545 = vsub.s32 %v542, %v544
        %v546 = vrot.slane %v392, %v545
        %vm547 = vcmask 458112
        %v548 = vsel %vm547, %v546, %v541
        %v549 = vadd.s32 %v502, 4294967240
        %v550 = vlaneseq
        %v551 = vshrl.u32 %v550, 7
        %v552 = vsub.s32 %v549, %v551
        %v553 = vrot.slane %v395, %v552
        %vm554 = vcmask 523712
        %v555 = vsel %vm554, %v553, %v548
        %v556 = vadd.s32 %v502, 4294967232
        %v557 = vlaneseq
        %v558 = vshrl.u32 %v557, 7
        %v559 = vsub.s32 %v556, %v558
        %v560 = vrot.slane %v398, %v559
        %vm561 = vcmask 589312
        %v562 = vsel %vm561, %v560, %v555
        %v563 = vadd.s32 %v502, 4294967224
        %v564 = vlaneseq
        %v565 = vshrl.u32 %v564, 7
        %v566 = vsub.s32 %v563, %v565
        %v567 = vrot.slane %v401, %v566
        %vm568 = vcmask 654912
        %v569 = vsel %vm568, %v567, %v562
        %v570 = vadd.s32 %v502, 4294967216
        %v571 = vlaneseq
        %v572 = vshrl.u32 %v571, 7
        %v573 = vsub.s32 %v570, %v572
        %v574 = vrot.slane %v404, %v573
        %vm575 = vcmask 720512
        %v576 = vsel %vm575, %v574, %v569
        %v577 = vadd.s32 %v502, 4294967208
        %v578 = vlaneseq
        %v579 = vshrl.u32 %v578, 7
        %v580 = vsub.s32 %v577, %v579
        %v581 = vrot.slane %v407, %v580
        %vm582 = vcmask 786112
        %v583 = vsel %vm582, %v581, %v576
        %v584 = vadd.s32 %v502, 4294967200
        %v585 = vlaneseq
        %v586 = vshrl.u32 %v585, 7
        %v587 = vsub.s32 %v584, %v586
        %v588 = vrot.slane %v410, %v587
        %vm589 = vcmask 851712
        %v590 = vsel %vm589, %v588, %v583
        %v591 = vadd.s32 %v502, 4294967192
        %v592 = vlaneseq
        %v593 = vshrl.u32 %v592, 7
        %v594 = vsub.s32 %v591, %v593
        %v595 = vrot.slane %v413, %v594
        %vm596 = vcmask 917312
        %v597 = vsel %vm596, %v595, %v590
        %v598 = vadd.s32 %v502, 4294967184
        %v599 = vlaneseq
        %v600 = vshrl.u32 %v599, 7
        %v601 = vsub.s32 %v598, %v600
        %v602 = vrot.slane %v416, %v601
        %vm603 = vcmask 982912
        %v604 = vsel %vm603, %v602, %v597
        %v605 = vadd.s32 %v502, 4294967176
        %v606 = vlaneseq
        %v607 = vshrl.u32 %v606, 7
        %v608 = vsub.s32 %v605, %v607
        %v609 = vrot.slane %v419, %v608
        %vm610 = vcmask 1048512
        %v611 = vsel %vm610, %v609, %v604
        %v612 = vlaneseq
        %v613 = vshrl.u32 %v612, 7
        %v614 = vsub.s32 %v502, %v613
        %v615 = vrot.slane %v422, %v614
        %v616 = vlaneseq
        %v617 = vshrl.u32 %v616, 7
        %v618 = vsub.s32 %v507, %v617
        %v619 = vrot.slane %v425, %v618
        %v620 = vsel %vm512, %v619, %v615
        %v621 = vlaneseq
        %v622 = vshrl.u32 %v621, 7
        %v623 = vsub.s32 %v514, %v622
        %v624 = vrot.slane %v428, %v623
        %v625 = vsel %vm519, %v624, %v620
        %v626 = vlaneseq
        %v627 = vshrl.u32 %v626, 7
        %v628 = vsub.s32 %v521, %v627
        %v629 = vrot.slane %v431, %v628
        %v630 = vsel %vm526, %v629, %v625
        %v631 = vlaneseq
        %v632 = vshrl.u32 %v631, 7
        %v633 = vsub.s32 %v528, %v632
        %v634 = vrot.slane %v434, %v633
        %v635 = vsel %vm533, %v634, %v630
        %v636 = vlaneseq
        %v637 = vshrl.u32 %v636, 7
        %v638 = vsub.s32 %v535, %v637
        %v639 = vrot.slane %v437, %v638
        %v640 = vsel %vm540, %v639, %v635
        %v641 = vlaneseq
        %v642 = vshrl.u32 %v641, 7
        %v643 = vsub.s32 %v542, %v642
        %v644 = vrot.slane %v440, %v643
        %v645 = vsel %vm547, %v644, %v640
        %v646 = vlaneseq
        %v647 = vshrl.u32 %v646, 7
        %v648 = vsub.s32 %v549, %v647
        %v649 = vrot.slane %v443, %v648
        %v650 = vsel %vm554, %v649, %v645
        %v651 = vlaneseq
        %v652 = vshrl.u32 %v651, 7
        %v653 = vsub.s32 %v556, %v652
        %v654 = vrot.slane %v446, %v653
        %v655 = vsel %vm561, %v654, %v650
        %v656 = vlaneseq
        %v657 = vshrl.u32 %v656, 7
        %v658 = vsub.s32 %v563, %v657
        %v659 = vrot.slane %v449, %v658
        %v660 = vsel %vm568, %v659, %v655
        %v661 = vlaneseq
        %v662 = vshrl.u32 %v661, 7
        %v663 = vsub.s32 %v570, %v662
        %v664 = vrot.slane %v452, %v663
        %v665 = vsel %vm575, %v664, %v660
        %v666 = vlaneseq
        %v667 = vshrl.u32 %v666, 7
        %v668 = vsub.s32 %v577, %v667
        %v669 = vrot.slane %v455, %v668
        %v670 = vsel %vm582, %v669, %v665
        %v671 = vlaneseq
        %v672 = vshrl.u32 %v671, 7
        %v673 = vsub.s32 %v584, %v672
        %v674 = vrot.slane %v458, %v673
        %v675 = vsel %vm589, %v674, %v670
        %v676 = vlaneseq
        %v677 = vshrl.u32 %v676, 7
        %v678 = vsub.s32 %v591, %v677
        %v679 = vrot.slane %v461, %v678
        %v680 = vsel %vm596, %v679, %v675
        %v681 = vlaneseq
        %v682 = vshrl.u32 %v681, 7
        %v683 = vsub.s32 %v598, %v682
        %v684 = vrot.slane %v464, %v683
        %v685 = vsel %vm603, %v684, %v680
        %v686 = vlaneseq
        %v687 = vshrl.u32 %v686, 7
        %v688 = vsub.s32 %v605, %v687
        %v689 = vrot.slane %v467, %v688
        %v690 = vsel %vm610, %v689, %v685
        %vm691 = vcmask 1041409
        %v692 = vsel %vm691, %v690, %v611
        %v694 = vmax.f32 %v468, %v692
        %v695 = vsub.f32 %v468, %v694
        %v696 = vmul.f32 %v695, 1.442695
        %v697 = vpow.pop %v696
        %v698 = vld [vmem:[#allocation3] sm:$0x3]
        %v699 = vmul.f32 %v697, %v698
        %v700 = vlaneseq
        %v701 = vshrl.u32 %v700, 7
        %v702 = vsub.s32 0, %v701
        %v703 = vrot.slane %v694, %v702
        %705 = vbcast.lane.b32.xlu0 %v703, 256
        %v706 = vpop.permute.xlu0 %705
        %s708 = sor.u32 256, 8
        %709 = vbcast.lane.b32.xlu0 %v703, %s708
        %v710 = vpop.permute.xlu0 %709
        %s712 = sor.u32 256, 16
        %713 = vbcast.lane.b32.xlu0 %v703, %s712
        %v714 = vpop.permute.xlu0 %713
        %s716 = sor.u32 256, 24
        %717 = vbcast.lane.b32.xlu0 %v703, %s716
        %v718 = vpop.permute.xlu0 %717
        %s720 = sor.u32 256, 32
        %721 = vbcast.lane.b32.xlu0 %v703, %s720
        %v722 = vpop.permute.xlu0 %721
        %s724 = sor.u32 256, 40
        %725 = vbcast.lane.b32.xlu0 %v703, %s724
        %v726 = vpop.permute.xlu0 %725
        %s728 = sor.u32 256, 48
        %729 = vbcast.lane.b32.xlu0 %v703, %s728
        %v730 = vpop.permute.xlu0 %729
        %s732 = sor.u32 256, 56
        %733 = vbcast.lane.b32.xlu0 %v703, %s732
        %v734 = vpop.permute.xlu0 %733
        %s736 = sor.u32 256, 64
        %737 = vbcast.lane.b32.xlu0 %v703, %s736
        %v738 = vpop.permute.xlu0 %737
        %s740 = sor.u32 256, 72
        %741 = vbcast.lane.b32.xlu0 %v703, %s740
        %v742 = vpop.permute.xlu0 %741
        %s744 = sor.u32 256, 80
        %745 = vbcast.lane.b32.xlu0 %v703, %s744
        %v746 = vpop.permute.xlu0 %745
        %s748 = sor.u32 256, 88
        %749 = vbcast.lane.b32.xlu0 %v703, %s748
        %v750 = vpop.permute.xlu0 %749
        %s752 = sor.u32 256, 96
        %753 = vbcast.lane.b32.xlu0 %v703, %s752
        %v754 = vpop.permute.xlu0 %753
        %s756 = sor.u32 256, 104
        %757 = vbcast.lane.b32.xlu0 %v703, %s756
        %v758 = vpop.permute.xlu0 %757
        %s760 = sor.u32 256, 112
        %761 = vbcast.lane.b32.xlu0 %v703, %s760
        %v762 = vpop.permute.xlu0 %761
        %s764 = sor.u32 256, 120
        %765 = vbcast.lane.b32.xlu0 %v703, %s764
        %v766 = vpop.permute.xlu0 %765
        %v767 = vlaneseq
        %v768 = vshrl.u32 %v767, 7
        %v769 = vsub.s32 1, %v768
        %v770 = vrot.slane %v694, %v769
        %772 = vbcast.lane.b32.xlu0 %v770, 256
        %v773 = vpop.permute.xlu0 %772
        %s775 = sor.u32 256, 8
        %776 = vbcast.lane.b32.xlu0 %v770, %s775
        %v777 = vpop.permute.xlu0 %776
        %s779 = sor.u32 256, 16
        %780 = vbcast.lane.b32.xlu0 %v770, %s779
        %v781 = vpop.permute.xlu0 %780
        %s783 = sor.u32 256, 24
        %784 = vbcast.lane.b32.xlu0 %v770, %s783
        %v785 = vpop.permute.xlu0 %784
        %s787 = sor.u32 256, 32
        %788 = vbcast.lane.b32.xlu0 %v770, %s787
        %v789 = vpop.permute.xlu0 %788
        %s791 = sor.u32 256, 40
        %792 = vbcast.lane.b32.xlu0 %v770, %s791
        %v793 = vpop.permute.xlu0 %792
        %s795 = sor.u32 256, 48
        %796 = vbcast.lane.b32.xlu0 %v770, %s795
        %v797 = vpop.permute.xlu0 %796
        %s799 = sor.u32 256, 56
        %800 = vbcast.lane.b32.xlu0 %v770, %s799
        %v801 = vpop.permute.xlu0 %800
        %s803 = sor.u32 256, 64
        %804 = vbcast.lane.b32.xlu0 %v770, %s803
        %v805 = vpop.permute.xlu0 %804
        %s807 = sor.u32 256, 72
        %808 = vbcast.lane.b32.xlu0 %v770, %s807
        %v809 = vpop.permute.xlu0 %808
        %s811 = sor.u32 256, 80
        %812 = vbcast.lane.b32.xlu0 %v770, %s811
        %v813 = vpop.permute.xlu0 %812
        %s815 = sor.u32 256, 88
        %816 = vbcast.lane.b32.xlu0 %v770, %s815
        %v817 = vpop.permute.xlu0 %816
        %s819 = sor.u32 256, 96
        %820 = vbcast.lane.b32.xlu0 %v770, %s819
        %v821 = vpop.permute.xlu0 %820
        %s823 = sor.u32 256, 104
        %824 = vbcast.lane.b32.xlu0 %v770, %s823
        %v825 = vpop.permute.xlu0 %824
        %s827 = sor.u32 256, 112
        %828 = vbcast.lane.b32.xlu0 %v770, %s827
        %v829 = vpop.permute.xlu0 %828
        %s831 = sor.u32 256, 120
        %832 = vbcast.lane.b32.xlu0 %v770, %s831
        %v833 = vpop.permute.xlu0 %832
        %v834 = vsub.f32 %v307, %v706
        %v835 = vsub.f32 %v308, %v706
        %v836 = vsub.f32 %v309, %v710
        %v837 = vsub.f32 %v310, %v710
        %v838 = vsub.f32 %v311, %v714
        %v839 = vsub.f32 %v312, %v714
        %v840 = vsub.f32 %v313, %v718
        %v841 = vsub.f32 %v314, %v718
        %v842 = vsub.f32 %v315, %v722
        %v843 = vsub.f32 %v316, %v722
        %v844 = vsub.f32 %v317, %v726
        %v845 = vsub.f32 %v318, %v726
        %v846 = vsub.f32 %v319, %v730
        %v847 = vsub.f32 %v320, %v730
        %v848 = vsub.f32 %v321, %v734
        %v849 = vsub.f32 %v322, %v734
        %v850 = vsub.f32 %v323, %v738
        %v851 = vsub.f32 %v324, %v738
        %v852 = vsub.f32 %v325, %v742
        %v853 = vsub.f32 %v326, %v742
        %v854 = vsub.f32 %v327, %v746
        %v855 = vsub.f32 %v328, %v746
        %v856 = vsub.f32 %v329, %v750
        %v857 = vsub.f32 %v330, %v750
        %v858 = vsub.f32 %v331, %v754
        %v859 = vsub.f32 %v332, %v754
        %v860 = vsub.f32 %v333, %v758
        %v861 = vsub.f32 %v334, %v758
        %v862 = vsub.f32 %v335, %v762
        %v863 = vsub.f32 %v336, %v762
        %v864 = vsub.f32 %v337, %v766
        %v865 = vsub.f32 %v338, %v766
        %v866 = vsub.f32 %v339, %v773
        %v867 = vsub.f32 %v340, %v773
        %v868 = vsub.f32 %v341, %v777
        %v869 = vsub.f32 %v342, %v777
        %v870 = vsub.f32 %v343, %v781
        %v871 = vsub.f32 %v344, %v781
        %v872 = vsub.f32 %v345, %v785
        %v873 = vsub.f32 %v346, %v785
        %v874 = vsub.f32 %v347, %v789
        %v875 = vsub.f32 %v348, %v789
        %v876 = vsub.f32 %v349, %v793
        %v877 = vsub.f32 %v350, %v793
        %v878 = vsub.f32 %v351, %v797
        %v879 = vsub.f32 %v352, %v797
        %v880 = vsub.f32 %v353, %v801
        %v881 = vsub.f32 %v354, %v801
        %v882 = vsub.f32 %v355, %v805
        %v883 = vsub.f32 %v356, %v805
        %v884 = vsub.f32 %v357, %v809
        %v885 = vsub.f32 %v358, %v809
        %v886 = vsub.f32 %v359, %v813
        %v887 = vsub.f32 %v360, %v813
        %v888 = vsub.f32 %v361, %v817
        %v889 = vsub.f32 %v362, %v817
        %v890 = vsub.f32 %v363, %v821
        %v891 = vsub.f32 %v364, %v821
        %v892 = vsub.f32 %v365, %v825
        %v893 = vsub.f32 %v366, %v825
        %v894 = vsub.f32 %v367, %v829
        %v895 = vsub.f32 %v368, %v829
        %v896 = vsub.f32 %v369, %v833
        %v897 = vsub.f32 %v370, %v833
        %v898 = vmul.f32 %v834, 1.442695
        %v899 = vpow.pop %v898
        %v900 = vmul.f32 %v835, 1.442695
        %v901 = vpow.pop %v900
        %v902 = vmul.f32 %v836, 1.442695
        %v903 = vpow.pop %v902
        %v904 = vmul.f32 %v837, 1.442695
        %v905 = vpow.pop %v904
        %v906 = vmul.f32 %v838, 1.442695
        %v907 = vpow.pop %v906
        %v908 = vmul.f32 %v839, 1.442695
        %v909 = vpow.pop %v908
        %v910 = vmul.f32 %v840, 1.442695
        %v911 = vpow.pop %v910
        %v912 = vmul.f32 %v841, 1.442695
        %v913 = vpow.pop %v912
        %v914 = vmul.f32 %v842, 1.442695
        %v915 = vpow.pop %v914
        %v916 = vmul.f32 %v843, 1.442695
        %v917 = vpow.pop %v916
        %v918 = vmul.f32 %v844, 1.442695
        %v919 = vpow.pop %v918
        %v920 = vmul.f32 %v845, 1.442695
        %v921 = vpow.pop %v920
        %v922 = vmul.f32 %v846, 1.442695
        %v923 = vpow.pop %v922
        %v924 = vmul.f32 %v847, 1.442695
        %v925 = vpow.pop %v924
        %v926 = vmul.f32 %v848, 1.442695
        %v927 = vpow.pop %v926
        %v928 = vmul.f32 %v849, 1.442695
        %v929 = vpow.pop %v928
        %v930 = vmul.f32 %v850, 1.442695
        %v931 = vpow.pop %v930
        %v932 = vmul.f32 %v851, 1.442695
        %v933 = vpow.pop %v932
        %v934 = vmul.f32 %v852, 1.442695
        %v935 = vpow.pop %v934
        %v936 = vmul.f32 %v853, 1.442695
        %v937 = vpow.pop %v936
        %v938 = vmul.f32 %v854, 1.442695
        %v939 = vpow.pop %v938
        %v940 = vmul.f32 %v855, 1.442695
        %v941 = vpow.pop %v940
        %v942 = vmul.f32 %v856, 1.442695
        %v943 = vpow.pop %v942
        %v944 = vmul.f32 %v857, 1.442695
        %v945 = vpow.pop %v944
        %v946 = vmul.f32 %v858, 1.442695
        %v947 = vpow.pop %v946
        %v948 = vmul.f32 %v859, 1.442695
        %v949 = vpow.pop %v948
        %v950 = vmul.f32 %v860, 1.442695
        %v951 = vpow.pop %v950
        %v952 = vmul.f32 %v861, 1.442695
        %v953 = vpow.pop %v952
        %v954 = vmul.f32 %v862, 1.442695
        %v955 = vpow.pop %v954
        %v956 = vmul.f32 %v863, 1.442695
        %v957 = vpow.pop %v956
        %v958 = vmul.f32 %v864, 1.442695
        %v959 = vpow.pop %v958
        %v960 = vmul.f32 %v865, 1.442695
        %v961 = vpow.pop %v960
        %v962 = vmul.f32 %v866, 1.442695
        %v963 = vpow.pop %v962
        %v964 = vmul.f32 %v867, 1.442695
        %v965 = vpow.pop %v964
        %v966 = vmul.f32 %v868, 1.442695
        %v967 = vpow.pop %v966
        %v968 = vmul.f32 %v869, 1.442695
        %v969 = vpow.pop %v968
        %v970 = vmul.f32 %v870, 1.442695
        %v971 = vpow.pop %v970
        %v972 = vmul.f32 %v871, 1.442695
        %v973 = vpow.pop %v972
        %v974 = vmul.f32 %v872, 1.442695
        %v975 = vpow.pop %v974
        %v976 = vmul.f32 %v873, 1.442695
        %v977 = vpow.pop %v976
        %v978 = vmul.f32 %v874, 1.442695
        %v979 = vpow.pop %v978
        %v980 = vmul.f32 %v875, 1.442695
        %v981 = vpow.pop %v980
        %v982 = vmul.f32 %v876, 1.442695
        %v983 = vpow.pop %v982
        %v984 = vmul.f32 %v877, 1.442695
        %v985 = vpow.pop %v984
        %v986 = vmul.f32 %v878, 1.442695
        %v987 = vpow.pop %v986
        %v988 = vmul.f32 %v879, 1.442695
        %v989 = vpow.pop %v988
        %v990 = vmul.f32 %v880, 1.442695
        %v991 = vpow.pop %v990
        %v992 = vmul.f32 %v881, 1.442695
        %v993 = vpow.pop %v992
        %v994 = vmul.f32 %v882, 1.442695
        %v995 = vpow.pop %v994
        %v996 = vmul.f32 %v883, 1.442695
        %v997 = vpow.pop %v996
        %v998 = vmul.f32 %v884, 1.442695
        %v999 = vpow.pop %v998
        %v1000 = vmul.f32 %v885, 1.442695
        %v1001 = vpow.pop %v1000
        %v1002 = vmul.f32 %v886, 1.442695
        %v1003 = vpow.pop %v1002
        %v1004 = vmul.f32 %v887, 1.442695
        %v1005 = vpow.pop %v1004
        %v1006 = vmul.f32 %v888, 1.442695
        %v1007 = vpow.pop %v1006
        %v1008 = vmul.f32 %v889, 1.442695
        %v1009 = vpow.pop %v1008
        %v1010 = vmul.f32 %v890, 1.442695
        %v1011 = vpow.pop %v1010
        %v1012 = vmul.f32 %v891, 1.442695
        %v1013 = vpow.pop %v1012
        %v1014 = vmul.f32 %v892, 1.442695
        %v1015 = vpow.pop %v1014
        %v1016 = vmul.f32 %v893, 1.442695
        %v1017 = vpow.pop %v1016
        %v1018 = vmul.f32 %v894, 1.442695
        %v1019 = vpow.pop %v1018
        %v1020 = vmul.f32 %v895, 1.442695
        %v1021 = vpow.pop %v1020
        %v1022 = vmul.f32 %v896, 1.442695
        %v1023 = vpow.pop %v1022
        %v1024 = vmul.f32 %v897, 1.442695
        %v1025 = vpow.pop %v1024
        %v1026 = vadd.f32 %v899, %v901
        %1027 = vadd.xlane.f32.xlu0 %v1026
        %v1028 = vpop.xlane.xlu0 %1027
        %v1029 = vadd.f32 %v903, %v905
        %1030 = vadd.xlane.f32.xlu0 %v1029
        %v1031 = vpop.xlane.xlu0 %1030
        %v1032 = vadd.f32 %v907, %v909
        %1033 = vadd.xlane.f32.xlu0 %v1032
        %v1034 = vpop.xlane.xlu0 %1033
        %v1035 = vadd.f32 %v911, %v913
        %1036 = vadd.xlane.f32.xlu0 %v1035
        %v1037 = vpop.xlane.xlu0 %1036
        %v1038 = vadd.f32 %v915, %v917
        %1039 = vadd.xlane.f32.xlu0 %v1038
        %v1040 = vpop.xlane.xlu0 %1039
        %v1041 = vadd.f32 %v919, %v921
        %1042 = vadd.xlane.f32.xlu0 %v1041
        %v1043 = vpop.xlane.xlu0 %1042
        %v1044 = vadd.f32 %v923, %v925
        %1045 = vadd.xlane.f32.xlu0 %v1044
        %v1046 = vpop.xlane.xlu0 %1045
        %v1047 = vadd.f32 %v927, %v929
        %1048 = vadd.xlane.f32.xlu0 %v1047
        %v1049 = vpop.xlane.xlu0 %1048
        %v1050 = vadd.f32 %v931, %v933
        %1051 = vadd.xlane.f32.xlu0 %v1050
        %v1052 = vpop.xlane.xlu0 %1051
        %v1053 = vadd.f32 %v935, %v937
        %1054 = vadd.xlane.f32.xlu0 %v1053
        %v1055 = vpop.xlane.xlu0 %1054
        %v1056 = vadd.f32 %v939, %v941
        %1057 = vadd.xlane.f32.xlu0 %v1056
        %v1058 = vpop.xlane.xlu0 %1057
        %v1059 = vadd.f32 %v943, %v945
        %1060 = vadd.xlane.f32.xlu0 %v1059
        %v1061 = vpop.xlane.xlu0 %1060
        %v1062 = vadd.f32 %v947, %v949
        %1063 = vadd.xlane.f32.xlu0 %v1062
        %v1064 = vpop.xlane.xlu0 %1063
        %v1065 = vadd.f32 %v951, %v953
        %1066 = vadd.xlane.f32.xlu0 %v1065
        %v1067 = vpop.xlane.xlu0 %1066
        %v1068 = vadd.f32 %v955, %v957
        %1069 = vadd.xlane.f32.xlu0 %v1068
        %v1070 = vpop.xlane.xlu0 %1069
        %v1071 = vadd.f32 %v959, %v961
        %1072 = vadd.xlane.f32.xlu0 %v1071
        %v1073 = vpop.xlane.xlu0 %1072
        %v1074 = vadd.f32 %v963, %v965
        %1075 = vadd.xlane.f32.xlu0 %v1074
        %v1076 = vpop.xlane.xlu0 %1075
        %v1077 = vadd.f32 %v967, %v969
        %1078 = vadd.xlane.f32.xlu0 %v1077
        %v1079 = vpop.xlane.xlu0 %1078
        %v1080 = vadd.f32 %v971, %v973
        %1081 = vadd.xlane.f32.xlu0 %v1080
        %v1082 = vpop.xlane.xlu0 %1081
        %v1083 = vadd.f32 %v975, %v977
        %1084 = vadd.xlane.f32.xlu0 %v1083
        %v1085 = vpop.xlane.xlu0 %1084
        %v1086 = vadd.f32 %v979, %v981
        %1087 = vadd.xlane.f32.xlu0 %v1086
        %v1088 = vpop.xlane.xlu0 %1087
        %v1089 = vadd.f32 %v983, %v985
        %1090 = vadd.xlane.f32.xlu0 %v1089
        %v1091 = vpop.xlane.xlu0 %1090
        %v1092 = vadd.f32 %v987, %v989
        %1093 = vadd.xlane.f32.xlu0 %v1092
        %v1094 = vpop.xlane.xlu0 %1093
        %v1095 = vadd.f32 %v991, %v993
        %1096 = vadd.xlane.f32.xlu0 %v1095
        %v1097 = vpop.xlane.xlu0 %1096
        %v1098 = vadd.f32 %v995, %v997
        %1099 = vadd.xlane.f32.xlu0 %v1098
        %v1100 = vpop.xlane.xlu0 %1099
        %v1101 = vadd.f32 %v999, %v1001
        %1102 = vadd.xlane.f32.xlu0 %v1101
        %v1103 = vpop.xlane.xlu0 %1102
        %v1104 = vadd.f32 %v1003, %v1005
        %1105 = vadd.xlane.f32.xlu0 %v1104
        %v1106 = vpop.xlane.xlu0 %1105
        %v1107 = vadd.f32 %v1007, %v1009
        %1108 = vadd.xlane.f32.xlu0 %v1107
        %v1109 = vpop.xlane.xlu0 %1108
        %v1110 = vadd.f32 %v1011, %v1013
        %1111 = vadd.xlane.f32.xlu0 %v1110
        %v1112 = vpop.xlane.xlu0 %1111
        %v1113 = vadd.f32 %v1015, %v1017
        %1114 = vadd.xlane.f32.xlu0 %v1113
        %v1115 = vpop.xlane.xlu0 %1114
        %v1116 = vadd.f32 %v1019, %v1021
        %1117 = vadd.xlane.f32.xlu0 %v1116
        %v1118 = vpop.xlane.xlu0 %1117
        %v1119 = vadd.f32 %v1023, %v1025
        %1120 = vadd.xlane.f32.xlu0 %v1119
        %v1121 = vpop.xlane.xlu0 %1120
        %v1154 = vlaneseq
        %v1155 = vshrl.u32 %v1154, 7
        %v1156 = vsub.s32 %v502, %v1155
        %v1157 = vrot.slane %v1028, %v1156
        %v1158 = vlaneseq
        %v1159 = vshrl.u32 %v1158, 7
        %v1160 = vsub.s32 %v507, %v1159
        %v1161 = vrot.slane %v1031, %v1160
        %v1162 = vsel %vm512, %v1161, %v1157
        %v1163 = vlaneseq
        %v1164 = vshrl.u32 %v1163, 7
        %v1165 = vsub.s32 %v514, %v1164
        %v1166 = vrot.slane %v1034, %v1165
        %v1167 = vsel %vm519, %v1166, %v1162
        %v1168 = vlaneseq
        %v1169 = vshrl.u32 %v1168, 7
        %v1170 = vsub.s32 %v521, %v1169
        %v1171 = vrot.slane %v1037, %v1170
        %v1172 = vsel %vm526, %v1171, %v1167
        %v1173 = vlaneseq
        %v1174 = vshrl.u32 %v1173, 7
        %v1175 = vsub.s32 %v528, %v1174
        %v1176 = vrot.slane %v1040, %v1175
        %v1177 = vsel %vm533, %v1176, %v1172
        %v1178 = vlaneseq
        %v1179 = vshrl.u32 %v1178, 7
        %v1180 = vsub.s32 %v535, %v1179
        %v1181 = vrot.slane %v1043, %v1180
        %v1182 = vsel %vm540, %v1181, %v1177
        %v1183 = vlaneseq
        %v1184 = vshrl.u32 %v1183, 7
        %v1185 = vsub.s32 %v542, %v1184
        %v1186 = vrot.slane %v1046, %v1185
        %v1187 = vsel %vm547, %v1186, %v1182
        %v1188 = vlaneseq
        %v1189 = vshrl.u32 %v1188, 7
        %v1190 = vsub.s32 %v549, %v1189
        %v1191 = vrot.slane %v1049, %v1190
        %v1192 = vsel %vm554, %v1191, %v1187
        %v1193 = vlaneseq
        %v1194 = vshrl.u32 %v1193, 7
        %v1195 = vsub.s32 %v556, %v1194
        %v1196 = vrot.slane %v1052, %v1195
        %v1197 = vsel %vm561, %v1196, %v1192
        %v1198 = vlaneseq
        %v1199 = vshrl.u32 %v1198, 7
        %v1200 = vsub.s32 %v563, %v1199
        %v1201 = vrot.slane %v1055, %v1200
        %v1202 = vsel %vm568, %v1201, %v1197
        %v1203 = vlaneseq
        %v1204 = vshrl.u32 %v1203, 7
        %v1205 = vsub.s32 %v570, %v1204
        %v1206 = vrot.slane %v1058, %v1205
        %v1207 = vsel %vm575, %v1206, %v1202
        %v1208 = vlaneseq
        %v1209 = vshrl.u32 %v1208, 7
        %v1210 = vsub.s32 %v577, %v1209
        %v1211 = vrot.slane %v1061, %v1210
        %v1212 = vsel %vm582, %v1211, %v1207
        %v1213 = vlaneseq
        %v1214 = vshrl.u32 %v1213, 7
        %v1215 = vsub.s32 %v584, %v1214
        %v1216 = vrot.slane %v1064, %v1215
        %v1217 = vsel %vm589, %v1216, %v1212
        %v1218 = vlaneseq
        %v1219 = vshrl.u32 %v1218, 7
        %v1220 = vsub.s32 %v591, %v1219
        %v1221 = vrot.slane %v1067, %v1220
        %v1222 = vsel %vm596, %v1221, %v1217
        %v1223 = vlaneseq
        %v1224 = vshrl.u32 %v1223, 7
        %v1225 = vsub.s32 %v598, %v1224
        %v1226 = vrot.slane %v1070, %v1225
        %v1227 = vsel %vm603, %v1226, %v1222
        %v1228 = vlaneseq
        %v1229 = vshrl.u32 %v1228, 7
        %v1230 = vsub.s32 %v605, %v1229
        %v1231 = vrot.slane %v1073, %v1230
        %v1232 = vsel %vm610, %v1231, %v1227
        %v1233 = vlaneseq
        %v1234 = vshrl.u32 %v1233, 7
        %v1235 = vsub.s32 %v502, %v1234
        %v1236 = vrot.slane %v1076, %v1235
        %v1237 = vlaneseq
        %v1238 = vshrl.u32 %v1237, 7
        %v1239 = vsub.s32 %v507, %v1238
        %v1240 = vrot.slane %v1079, %v1239
        %v1241 = vsel %vm512, %v1240, %v1236
        %v1242 = vlaneseq
        %v1243 = vshrl.u32 %v1242, 7
        %v1244 = vsub.s32 %v514, %v1243
        %v1245 = vrot.slane %v1082, %v1244
        %v1246 = vsel %vm519, %v1245, %v1241
        %v1247 = vlaneseq
        %v1248 = vshrl.u32 %v1247, 7
        %v1249 = vsub.s32 %v521, %v1248
        %v1250 = vrot.slane %v1085, %v1249
        %v1251 = vsel %vm526, %v1250, %v1246
        %v1252 = vlaneseq
        %v1253 = vshrl.u32 %v1252, 7
        %v1254 = vsub.s32 %v528, %v1253
        %v1255 = vrot.slane %v1088, %v1254
        %v1256 = vsel %vm533, %v1255, %v1251
        %v1257 = vlaneseq
        %v1258 = vshrl.u32 %v1257, 7
        %v1259 = vsub.s32 %v535, %v1258
        %v1260 = vrot.slane %v1091, %v1259
        %v1261 = vsel %vm540, %v1260, %v1256
        %v1262 = vlaneseq
        %v1263 = vshrl.u32 %v1262, 7
        %v1264 = vsub.s32 %v542, %v1263
        %v1265 = vrot.slane %v1094, %v1264
        %v1266 = vsel %vm547, %v1265, %v1261
        %v1267 = vlaneseq
        %v1268 = vshrl.u32 %v1267, 7
        %v1269 = vsub.s32 %v549, %v1268
        %v1270 = vrot.slane %v1097, %v1269
        %v1271 = vsel %vm554, %v1270, %v1266
        %v1272 = vlaneseq
        %v1273 = vshrl.u32 %v1272, 7
        %v1274 = vsub.s32 %v556, %v1273
        %v1275 = vrot.slane %v1100, %v1274
        %v1276 = vsel %vm561, %v1275, %v1271
        %v1277 = vlaneseq
        %v1278 = vshrl.u32 %v1277, 7
        %v1279 = vsub.s32 %v563, %v1278
        %v1280 = vrot.slane %v1103, %v1279
        %v1281 = vsel %vm568, %v1280, %v1276
        %v1282 = vlaneseq
        %v1283 = vshrl.u32 %v1282, 7
        %v1284 = vsub.s32 %v570, %v1283
        %v1285 = vrot.slane %v1106, %v1284
        %v1286 = vsel %vm575, %v1285, %v1281
        %v1287 = vlaneseq
        %v1288 = vshrl.u32 %v1287, 7
        %v1289 = vsub.s32 %v577, %v1288
        %v1290 = vrot.slane %v1109, %v1289
        %v1291 = vsel %vm582, %v1290, %v1286
        %v1292 = vlaneseq
        %v1293 = vshrl.u32 %v1292, 7
        %v1294 = vsub.s32 %v584, %v1293
        %v1295 = vrot.slane %v1112, %v1294
        %v1296 = vsel %vm589, %v1295, %v1291
        %v1297 = vlaneseq
        %v1298 = vshrl.u32 %v1297, 7
        %v1299 = vsub.s32 %v591, %v1298
        %v1300 = vrot.slane %v1115, %v1299
        %v1301 = vsel %vm596, %v1300, %v1296
        %v1302 = vlaneseq
        %v1303 = vshrl.u32 %v1302, 7
        %v1304 = vsub.s32 %v598, %v1303
        %v1305 = vrot.slane %v1118, %v1304
        %v1306 = vsel %vm603, %v1305, %v1301
        %v1307 = vlaneseq
        %v1308 = vshrl.u32 %v1307, 7
        %v1309 = vsub.s32 %v605, %v1308
        %v1310 = vrot.slane %v1121, %v1309
        %v1311 = vsel %vm610, %v1310, %v1306
        %v1312 = vsel %vm691, %v1311, %v1232
        %v1314 = vadd.f32 %v699, %v1312
        %1315 = vst [vmem:[#allocation3] sm:$0x3] %v1314
        %1316 = vst [vmem:[#allocation2] sm:$0x3] %v694
        %v1317 = vadd.s32 %v502, 128
        %s1318 = smul.u32 %s34, 256
        %v1319 = vstv %s1318
        %v1320 = vsub.s32 %v371, %v1319
        %v1321 = vlaneseq
        %v1322 = vshrl.u32 %v1321, 7
        %v1323 = vsub.s32 0, %v1322
        %v1324 = vrot.slane %v1320, %v1323
        %1326 = vbcast.lane.b32.xlu0 %v1324, 256
        %v1327 = vpop.permute.xlu0 %1326
        %s1329 = sor.u32 256, 8
        %1330 = vbcast.lane.b32.xlu0 %v1324, %s1329
        %v1331 = vpop.permute.xlu0 %1330
        %s1333 = sor.u32 256, 16
        %1334 = vbcast.lane.b32.xlu0 %v1324, %s1333
        %v1335 = vpop.permute.xlu0 %1334
        %s1337 = sor.u32 256, 24
        %1338 = vbcast.lane.b32.xlu0 %v1324, %s1337
        %v1339 = vpop.permute.xlu0 %1338
        %s1341 = sor.u32 256, 32
        %1342 = vbcast.lane.b32.xlu0 %v1324, %s1341
        %v1343 = vpop.permute.xlu0 %1342
        %s1345 = sor.u32 256, 40
        %1346 = vbcast.lane.b32.xlu0 %v1324, %s1345
        %v1347 = vpop.permute.xlu0 %1346
        %s1349 = sor.u32 256, 48
        %1350 = vbcast.lane.b32.xlu0 %v1324, %s1349
        %v1351 = vpop.permute.xlu0 %1350
        %s1353 = sor.u32 256, 56
        %1354 = vbcast.lane.b32.xlu0 %v1324, %s1353
        %v1355 = vpop.permute.xlu0 %1354
        %s1357 = sor.u32 256, 64
        %1358 = vbcast.lane.b32.xlu0 %v1324, %s1357
        %v1359 = vpop.permute.xlu0 %1358
        %s1361 = sor.u32 256, 72
        %1362 = vbcast.lane.b32.xlu0 %v1324, %s1361
        %v1363 = vpop.permute.xlu0 %1362
        %s1365 = sor.u32 256, 80
        %1366 = vbcast.lane.b32.xlu0 %v1324, %s1365
        %v1367 = vpop.permute.xlu0 %1366
        %s1369 = sor.u32 256, 88
        %1370 = vbcast.lane.b32.xlu0 %v1324, %s1369
        %v1371 = vpop.permute.xlu0 %1370
        %s1373 = sor.u32 256, 96
        %1374 = vbcast.lane.b32.xlu0 %v1324, %s1373
        %v1375 = vpop.permute.xlu0 %1374
        %s1377 = sor.u32 256, 104
        %1378 = vbcast.lane.b32.xlu0 %v1324, %s1377
        %v1379 = vpop.permute.xlu0 %1378
        %s1381 = sor.u32 256, 112
        %1382 = vbcast.lane.b32.xlu0 %v1324, %s1381
        %v1383 = vpop.permute.xlu0 %1382
        %s1385 = sor.u32 256, 120
        %1386 = vbcast.lane.b32.xlu0 %v1324, %s1385
        %v1387 = vpop.permute.xlu0 %1386
        %v1388 = vlaneseq
        %v1389 = vshrl.u32 %v1388, 7
        %v1390 = vsub.s32 1, %v1389
        %v1391 = vrot.slane %v1320, %v1390
        %1393 = vbcast.lane.b32.xlu0 %v1391, 256
        %v1394 = vpop.permute.xlu0 %1393
        %s1396 = sor.u32 256, 8
        %1397 = vbcast.lane.b32.xlu0 %v1391, %s1396
        %v1398 = vpop.permute.xlu0 %1397
        %s1400 = sor.u32 256, 16
        %1401 = vbcast.lane.b32.xlu0 %v1391, %s1400
        %v1402 = vpop.permute.xlu0 %1401
        %s1404 = sor.u32 256, 24
        %1405 = vbcast.lane.b32.xlu0 %v1391, %s1404
        %v1406 = vpop.permute.xlu0 %1405
        %s1408 = sor.u32 256, 32
        %1409 = vbcast.lane.b32.xlu0 %v1391, %s1408
        %v1410 = vpop.permute.xlu0 %1409
        %s1412 = sor.u32 256, 40
        %1413 = vbcast.lane.b32.xlu0 %v1391, %s1412
        %v1414 = vpop.permute.xlu0 %1413
        %s1416 = sor.u32 256, 48
        %1417 = vbcast.lane.b32.xlu0 %v1391, %s1416
        %v1418 = vpop.permute.xlu0 %1417
        %s1420 = sor.u32 256, 56
        %1421 = vbcast.lane.b32.xlu0 %v1391, %s1420
        %v1422 = vpop.permute.xlu0 %1421
        %s1424 = sor.u32 256, 64
        %1425 = vbcast.lane.b32.xlu0 %v1391, %s1424
        %v1426 = vpop.permute.xlu0 %1425
        %s1428 = sor.u32 256, 72
        %1429 = vbcast.lane.b32.xlu0 %v1391, %s1428
        %v1430 = vpop.permute.xlu0 %1429
        %s1432 = sor.u32 256, 80
        %1433 = vbcast.lane.b32.xlu0 %v1391, %s1432
        %v1434 = vpop.permute.xlu0 %1433
        %s1436 = sor.u32 256, 88
        %1437 = vbcast.lane.b32.xlu0 %v1391, %s1436
        %v1438 = vpop.permute.xlu0 %1437
        %s1440 = sor.u32 256, 96
        %1441 = vbcast.lane.b32.xlu0 %v1391, %s1440
        %v1442 = vpop.permute.xlu0 %1441
        %s1444 = sor.u32 256, 104
        %1445 = vbcast.lane.b32.xlu0 %v1391, %s1444
        %v1446 = vpop.permute.xlu0 %1445
        %s1448 = sor.u32 256, 112
        %1449 = vbcast.lane.b32.xlu0 %v1391, %s1448
        %v1450 = vpop.permute.xlu0 %1449
        %s1452 = sor.u32 256, 120
        %1453 = vbcast.lane.b32.xlu0 %v1391, %s1452
        %v1454 = vpop.permute.xlu0 %1453
        %vm1455 = vcmp.eq.s32.totalorder %v502, %v1327
        %vm1456 = vcmp.eq.s32.totalorder %v1317, %v1327
        %vm1457 = vcmp.eq.s32.totalorder %v502, %v1331
        %vm1458 = vcmp.eq.s32.totalorder %v1317, %v1331
        %vm1459 = vcmp.eq.s32.totalorder %v502, %v1335
        %vm1460 = vcmp.eq.s32.totalorder %v1317, %v1335
        %vm1461 = vcmp.eq.s32.totalorder %v502, %v1339
        %vm1462 = vcmp.eq.s32.totalorder %v1317, %v1339
        %vm1463 = vcmp.eq.s32.totalorder %v502, %v1343
        %vm1464 = vcmp.eq.s32.totalorder %v1317, %v1343
        %vm1465 = vcmp.eq.s32.totalorder %v502, %v1347
        %vm1466 = vcmp.eq.s32.totalorder %v1317, %v1347
        %vm1467 = vcmp.eq.s32.totalorder %v502, %v1351
        %vm1468 = vcmp.eq.s32.totalorder %v1317, %v1351
        %vm1469 = vcmp.eq.s32.totalorder %v502, %v1355
        %vm1470 = vcmp.eq.s32.totalorder %v1317, %v1355
        %vm1471 = vcmp.eq.s32.totalorder %v502, %v1359
        %vm1472 = vcmp.eq.s32.totalorder %v1317, %v1359
        %vm1473 = vcmp.eq.s32.totalorder %v502, %v1363
        %vm1474 = vcmp.eq.s32.totalorder %v1317, %v1363
        %vm1475 = vcmp.eq.s32.totalorder %v502, %v1367
        %vm1476 = vcmp.eq.s32.totalorder %v1317, %v1367
        %vm1477 = vcmp.eq.s32.totalorder %v502, %v1371
        %vm1478 = vcmp.eq.s32.totalorder %v1317, %v1371
        %vm1479 = vcmp.eq.s32.totalorder %v502, %v1375
        %vm1480 = vcmp.eq.s32.totalorder %v1317, %v1375
        %vm1481 = vcmp.eq.s32.totalorder %v502, %v1379
        %vm1482 = vcmp.eq.s32.totalorder %v1317, %v1379
        %vm1483 = vcmp.eq.s32.totalorder %v502, %v1383
        %vm1484 = vcmp.eq.s32.totalorder %v1317, %v1383
        %vm1485 = vcmp.eq.s32.totalorder %v502, %v1387
        %vm1486 = vcmp.eq.s32.totalorder %v1317, %v1387
        %vm1487 = vcmp.eq.s32.totalorder %v502, %v1394
        %vm1488 = vcmp.eq.s32.totalorder %v1317, %v1394
        %vm1489 = vcmp.eq.s32.totalorder %v502, %v1398
        %vm1490 = vcmp.eq.s32.totalorder %v1317, %v1398
        %vm1491 = vcmp.eq.s32.totalorder %v502, %v1402
        %vm1492 = vcmp.eq.s32.totalorder %v1317, %v1402
        %vm1493 = vcmp.eq.s32.totalorder %v502, %v1406
        %vm1494 = vcmp.eq.s32.totalorder %v1317, %v1406
        %vm1495 = vcmp.eq.s32.totalorder %v502, %v1410
        %vm1496 = vcmp.eq.s32.totalorder %v1317, %v1410
        %vm1497 = vcmp.eq.s32.totalorder %v502, %v1414
        %vm1498 = vcmp.eq.s32.totalorder %v1317, %v1414
        %vm1499 = vcmp.eq.s32.totalorder %v502, %v1418
        %vm1500 = vcmp.eq.s32.totalorder %v1317, %v1418
        %vm1501 = vcmp.eq.s32.totalorder %v502, %v1422
        %vm1502 = vcmp.eq.s32.totalorder %v1317, %v1422
        %vm1503 = vcmp.eq.s32.totalorder %v502, %v1426
        %vm1504 = vcmp.eq.s32.totalorder %v1317, %v1426
        %vm1505 = vcmp.eq.s32.totalorder %v502, %v1430
        %vm1506 = vcmp.eq.s32.totalorder %v1317, %v1430
        %vm1507 = vcmp.eq.s32.totalorder %v502, %v1434
        %vm1508 = vcmp.eq.s32.totalorder %v1317, %v1434
        %vm1509 = vcmp.eq.s32.totalorder %v502, %v1438
        %vm1510 = vcmp.eq.s32.totalorder %v1317, %v1438
        %vm1511 = vcmp.eq.s32.totalorder %v502, %v1442
        %vm1512 = vcmp.eq.s32.totalorder %v1317, %v1442
        %vm1513 = vcmp.eq.s32.totalorder %v502, %v1446
        %vm1514 = vcmp.eq.s32.totalorder %v1317, %v1446
        %vm1515 = vcmp.eq.s32.totalorder %v502, %v1450
        %vm1516 = vcmp.eq.s32.totalorder %v1317, %v1450
        %vm1517 = vcmp.eq.s32.totalorder %v502, %v1454
        %vm1518 = vcmp.eq.s32.totalorder %v1317, %v1454
        %v1519 = vld [vmem:[#allocation4] sm:$0x3]
        %v1520 = vsel %vm1455, %v307, 0.0
        %v1521 = vsel %vm1456, %v308, 0.0
        %v1522 = vsel %vm1457, %v309, 0.0
        %v1523 = vsel %vm1458, %v310, 0.0
        %v1524 = vsel %vm1459, %v311, 0.0
        %v1525 = vsel %vm1460, %v312, 0.0
        %v1526 = vsel %vm1461, %v313, 0.0
        %v1527 = vsel %vm1462, %v314, 0.0
        %v1528 = vsel %vm1463, %v315, 0.0
        %v1529 = vsel %vm1464, %v316, 0.0
        %v1530 = vsel %vm1465, %v317, 0.0
        %v1531 = vsel %vm1466, %v318, 0.0
        %v1532 = vsel %vm1467, %v319, 0.0
        %v1533 = vsel %vm1468, %v320, 0.0
        %v1534 = vsel %vm1469, %v321, 0.0
        %v1535 = vsel %vm1470, %v322, 0.0
        %v1536 = vsel %vm1471, %v323, 0.0
        %v1537 = vsel %vm1472, %v324, 0.0
        %v1538 = vsel %vm1473, %v325, 0.0
        %v1539 = vsel %vm1474, %v326, 0.0
        %v1540 = vsel %vm1475, %v327, 0.0
        %v1541 = vsel %vm1476, %v328, 0.0
        %v1542 = vsel %vm1477, %v329, 0.0
        %v1543 = vsel %vm1478, %v330, 0.0
        %v1544 = vsel %vm1479, %v331, 0.0
        %v1545 = vsel %vm1480, %v332, 0.0
        %v1546 = vsel %vm1481, %v333, 0.0
        %v1547 = vsel %vm1482, %v334, 0.0
        %v1548 = vsel %vm1483, %v335, 0.0
        %v1549 = vsel %vm1484, %v336, 0.0
        %v1550 = vsel %vm1485, %v337, 0.0
        %v1551 = vsel %vm1486, %v338, 0.0
        %v1552 = vsel %vm1487, %v339, 0.0
        %v1553 = vsel %vm1488, %v340, 0.0
        %v1554 = vsel %vm1489, %v341, 0.0
        %v1555 = vsel %vm1490, %v342, 0.0
        %v1556 = vsel %vm1491, %v343, 0.0
        %v1557 = vsel %vm1492, %v344, 0.0
        %v1558 = vsel %vm1493, %v345, 0.0
        %v1559 = vsel %vm1494, %v346, 0.0
        %v1560 = vsel %vm1495, %v347, 0.0
        %v1561 = vsel %vm1496, %v348, 0.0
        %v1562 = vsel %vm1497, %v349, 0.0
        %v1563 = vsel %vm1498, %v350, 0.0
        %v1564 = vsel %vm1499, %v351, 0.0
        %v1565 = vsel %vm1500, %v352, 0.0
        %v1566 = vsel %vm1501, %v353, 0.0
        %v1567 = vsel %vm1502, %v354, 0.0
        %v1568 = vsel %vm1503, %v355, 0.0
        %v1569 = vsel %vm1504, %v356, 0.0
        %v1570 = vsel %vm1505, %v357, 0.0
        %v1571 = vsel %vm1506, %v358, 0.0
        %v1572 = vsel %vm1507, %v359, 0.0
        %v1573 = vsel %vm1508, %v360, 0.0
        %v1574 = vsel %vm1509, %v361, 0.0
        %v1575 = vsel %vm1510, %v362, 0.0
        %v1576 = vsel %vm1511, %v363, 0.0
        %v1577 = vsel %vm1512, %v364, 0.0
        %v1578 = vsel %vm1513, %v365, 0.0
        %v1579 = vsel %vm1514, %v366, 0.0
        %v1580 = vsel %vm1515, %v367, 0.0
        %v1581 = vsel %vm1516, %v368, 0.0
        %v1582 = vsel %vm1517, %v369, 0.0
        %v1583 = vsel %vm1518, %v370, 0.0
        %v1584 = vadd.f32 %v1520, %v1521
        %1585 = vadd.xlane.f32.xlu0 %v1584
        %v1586 = vpop.xlane.xlu0 %1585
        %v1587 = vadd.f32 %v1522, %v1523
        %1588 = vadd.xlane.f32.xlu0 %v1587
        %v1589 = vpop.xlane.xlu0 %1588
        %v1590 = vadd.f32 %v1524, %v1525
        %1591 = vadd.xlane.f32.xlu0 %v1590
        %v1592 = vpop.xlane.xlu0 %1591
        %v1593 = vadd.f32 %v1526, %v1527
        %1594 = vadd.xlane.f32.xlu0 %v1593
        %v1595 = vpop.xlane.xlu0 %1594
        %v1596 = vadd.f32 %v1528, %v1529
        %1597 = vadd.xlane.f32.xlu0 %v1596
        %v1598 = vpop.xlane.xlu0 %1597
        %v1599 = vadd.f32 %v1530, %v1531
        %1600 = vadd.xlane.f32.xlu0 %v1599
        %v1601 = vpop.xlane.xlu0 %1600
        %v1602 = vadd.f32 %v1532, %v1533
        %1603 = vadd.xlane.f32.xlu0 %v1602
        %v1604 = vpop.xlane.xlu0 %1603
        %v1605 = vadd.f32 %v1534, %v1535
        %1606 = vadd.xlane.f32.xlu0 %v1605
        %v1607 = vpop.xlane.xlu0 %1606
        %v1608 = vadd.f32 %v1536, %v1537
        %1609 = vadd.xlane.f32.xlu0 %v1608
        %v1610 = vpop.xlane.xlu0 %1609
        %v1611 = vadd.f32 %v1538, %v1539
        %1612 = vadd.xlane.f32.xlu0 %v1611
        %v1613 = vpop.xlane.xlu0 %1612
        %v1614 = vadd.f32 %v1540, %v1541
        %1615 = vadd.xlane.f32.xlu0 %v1614
        %v1616 = vpop.xlane.xlu0 %1615
        %v1617 = vadd.f32 %v1542, %v1543
        %1618 = vadd.xlane.f32.xlu0 %v1617
        %v1619 = vpop.xlane.xlu0 %1618
        %v1620 = vadd.f32 %v1544, %v1545
        %1621 = vadd.xlane.f32.xlu0 %v1620
        %v1622 = vpop.xlane.xlu0 %1621
        %v1623 = vadd.f32 %v1546, %v1547
        %1624 = vadd.xlane.f32.xlu0 %v1623
        %v1625 = vpop.xlane.xlu0 %1624
        %v1626 = vadd.f32 %v1548, %v1549
        %1627 = vadd.xlane.f32.xlu0 %v1626
        %v1628 = vpop.xlane.xlu0 %1627
        %v1629 = vadd.f32 %v1550, %v1551
        %1630 = vadd.xlane.f32.xlu0 %v1629
        %v1631 = vpop.xlane.xlu0 %1630
        %v1632 = vadd.f32 %v1552, %v1553
        %1633 = vadd.xlane.f32.xlu0 %v1632
        %v1634 = vpop.xlane.xlu0 %1633
        %v1635 = vadd.f32 %v1554, %v1555
        %1636 = vadd.xlane.f32.xlu0 %v1635
        %v1637 = vpop.xlane.xlu0 %1636
        %v1638 = vadd.f32 %v1556, %v1557
        %1639 = vadd.xlane.f32.xlu0 %v1638
        %v1640 = vpop.xlane.xlu0 %1639
        %v1641 = vadd.f32 %v1558, %v1559
        %1642 = vadd.xlane.f32.xlu0 %v1641
        %v1643 = vpop.xlane.xlu0 %1642
        %v1644 = vadd.f32 %v1560, %v1561
        %1645 = vadd.xlane.f32.xlu0 %v1644
        %v1646 = vpop.xlane.xlu0 %1645
        %v1647 = vadd.f32 %v1562, %v1563
        %1648 = vadd.xlane.f32.xlu0 %v1647
        %v1649 = vpop.xlane.xlu0 %1648
        %v1650 = vadd.f32 %v1564, %v1565
        %1651 = vadd.xlane.f32.xlu0 %v1650
        %v1652 = vpop.xlane.xlu0 %1651
        %v1653 = vadd.f32 %v1566, %v1567
        %1654 = vadd.xlane.f32.xlu0 %v1653
        %v1655 = vpop.xlane.xlu0 %1654
        %v1656 = vadd.f32 %v1568, %v1569
        %1657 = vadd.xlane.f32.xlu0 %v1656
        %v1658 = vpop.xlane.xlu0 %1657
        %v1659 = vadd.f32 %v1570, %v1571
        %1660 = vadd.xlane.f32.xlu0 %v1659
        %v1661 = vpop.xlane.xlu0 %1660
        %v1662 = vadd.f32 %v1572, %v1573
        %1663 = vadd.xlane.f32.xlu0 %v1662
        %v1664 = vpop.xlane.xlu0 %1663
        %v1665 = vadd.f32 %v1574, %v1575
        %1666 = vadd.xlane.f32.xlu0 %v1665
        %v1667 = vpop.xlane.xlu0 %1666
        %v1668 = vadd.f32 %v1576, %v1577
        %1669 = vadd.xlane.f32.xlu0 %v1668
        %v1670 = vpop.xlane.xlu0 %1669
        %v1671 = vadd.f32 %v1578, %v1579
        %1672 = vadd.xlane.f32.xlu0 %v1671
        %v1673 = vpop.xlane.xlu0 %1672
        %v1674 = vadd.f32 %v1580, %v1581
        %1675 = vadd.xlane.f32.xlu0 %v1674
        %v1676 = vpop.xlane.xlu0 %1675
        %v1677 = vadd.f32 %v1582, %v1583
        %1678 = vadd.xlane.f32.xlu0 %v1677
        %v1679 = vpop.xlane.xlu0 %1678
        %v1712 = vlaneseq
        %v1713 = vshrl.u32 %v1712, 7
        %v1714 = vsub.s32 %v502, %v1713
        %v1715 = vrot.slane %v1586, %v1714
        %v1716 = vlaneseq
        %v1717 = vshrl.u32 %v1716, 7
        %v1718 = vsub.s32 %v507, %v1717
        %v1719 = vrot.slane %v1589, %v1718
        %v1720 = vsel %vm512, %v1719, %v1715
        %v1721 = vlaneseq
        %v1722 = vshrl.u32 %v1721, 7
        %v1723 = vsub.s32 %v514, %v1722
        %v1724 = vrot.slane %v1592, %v1723
        %v1725 = vsel %vm519, %v1724, %v1720
        %v1726 = vlaneseq
        %v1727 = vshrl.u32 %v1726, 7
        %v1728 = vsub.s32 %v521, %v1727
        %v1729 = vrot.slane %v1595, %v1728
        %v1730 = vsel %vm526, %v1729, %v1725
        %v1731 = vlaneseq
        %v1732 = vshrl.u32 %v1731, 7
        %v1733 = vsub.s32 %v528, %v1732
        %v1734 = vrot.slane %v1598, %v1733
        %v1735 = vsel %vm533, %v1734, %v1730
        %v1736 = vlaneseq
        %v1737 = vshrl.u32 %v1736, 7
        %v1738 = vsub.s32 %v535, %v1737
        %v1739 = vrot.slane %v1601, %v1738
        %v1740 = vsel %vm540, %v1739, %v1735
        %v1741 = vlaneseq
        %v1742 = vshrl.u32 %v1741, 7
        %v1743 = vsub.s32 %v542, %v1742
        %v1744 = vrot.slane %v1604, %v1743
        %v1745 = vsel %vm547, %v1744, %v1740
        %v1746 = vlaneseq
        %v1747 = vshrl.u32 %v1746, 7
        %v1748 = vsub.s32 %v549, %v1747
        %v1749 = vrot.slane %v1607, %v1748
        %v1750 = vsel %vm554, %v1749, %v1745
        %v1751 = vlaneseq
        %v1752 = vshrl.u32 %v1751, 7
        %v1753 = vsub.s32 %v556, %v1752
        %v1754 = vrot.slane %v1610, %v1753
        %v1755 = vsel %vm561, %v1754, %v1750
        %v1756 = vlaneseq
        %v1757 = vshrl.u32 %v1756, 7
        %v1758 = vsub.s32 %v563, %v1757
        %v1759 = vrot.slane %v1613, %v1758
        %v1760 = vsel %vm568, %v1759, %v1755
        %v1761 = vlaneseq
        %v1762 = vshrl.u32 %v1761, 7
        %v1763 = vsub.s32 %v570, %v1762
        %v1764 = vrot.slane %v1616, %v1763
        %v1765 = vsel %vm575, %v1764, %v1760
        %v1766 = vlaneseq
        %v1767 = vshrl.u32 %v1766, 7
        %v1768 = vsub.s32 %v577, %v1767
        %v1769 = vrot.slane %v1619, %v1768
        %v1770 = vsel %vm582, %v1769, %v1765
        %v1771 = vlaneseq
        %v1772 = vshrl.u32 %v1771, 7
        %v1773 = vsub.s32 %v584, %v1772
        %v1774 = vrot.slane %v1622, %v1773
        %v1775 = vsel %vm589, %v1774, %v1770
        %v1776 = vlaneseq
        %v1777 = vshrl.u32 %v1776, 7
        %v1778 = vsub.s32 %v591, %v1777
        %v1779 = vrot.slane %v1625, %v1778
        %v1780 = vsel %vm596, %v1779, %v1775
        %v1781 = vlaneseq
        %v1782 = vshrl.u32 %v1781, 7
        %v1783 = vsub.s32 %v598, %v1782
        %v1784 = vrot.slane %v1628, %v1783
        %v1785 = vsel %vm603, %v1784, %v1780
        %v1786 = vlaneseq
        %v1787 = vshrl.u32 %v1786, 7
        %v1788 = vsub.s32 %v605, %v1787
        %v1789 = vrot.slane %v1631, %v1788
        %v1790 = vsel %vm610, %v1789, %v1785
        %v1791 = vlaneseq
        %v1792 = vshrl.u32 %v1791, 7
        %v1793 = vsub.s32 %v502, %v1792
        %v1794 = vrot.slane %v1634, %v1793
        %v1795 = vlaneseq
        %v1796 = vshrl.u32 %v1795, 7
        %v1797 = vsub.s32 %v507, %v1796
        %v1798 = vrot.slane %v1637, %v1797
        %v1799 = vsel %vm512, %v1798, %v1794
        %v1800 = vlaneseq
        %v1801 = vshrl.u32 %v1800, 7
        %v1802 = vsub.s32 %v514, %v1801
        %v1803 = vrot.slane %v1640, %v1802
        %v1804 = vsel %vm519, %v1803, %v1799
        %v1805 = vlaneseq
        %v1806 = vshrl.u32 %v1805, 7
        %v1807 = vsub.s32 %v521, %v1806
        %v1808 = vrot.slane %v1643, %v1807
        %v1809 = vsel %vm526, %v1808, %v1804
        %v1810 = vlaneseq
        %v1811 = vshrl.u32 %v1810, 7
        %v1812 = vsub.s32 %v528, %v1811
        %v1813 = vrot.slane %v1646, %v1812
        %v1814 = vsel %vm533, %v1813, %v1809
        %v1815 = vlaneseq
        %v1816 = vshrl.u32 %v1815, 7
        %v1817 = vsub.s32 %v535, %v1816
        %v1818 = vrot.slane %v1649, %v1817
        %v1819 = vsel %vm540, %v1818, %v1814
        %v1820 = vlaneseq
        %v1821 = vshrl.u32 %v1820, 7
        %v1822 = vsub.s32 %v542, %v1821
        %v1823 = vrot.slane %v1652, %v1822
        %v1824 = vsel %vm547, %v1823, %v1819
        %v1825 = vlaneseq
        %v1826 = vshrl.u32 %v1825, 7
        %v1827 = vsub.s32 %v549, %v1826
        %v1828 = vrot.slane %v1655, %v1827
        %v1829 = vsel %vm554, %v1828, %v1824
        %v1830 = vlaneseq
        %v1831 = vshrl.u32 %v1830, 7
        %v1832 = vsub.s32 %v556, %v1831
        %v1833 = vrot.slane %v1658, %v1832
        %v1834 = vsel %vm561, %v1833, %v1829
        %v1835 = vlaneseq
        %v1836 = vshrl.u32 %v1835, 7
        %v1837 = vsub.s32 %v563, %v1836
        %v1838 = vrot.slane %v1661, %v1837
        %v1839 = vsel %vm568, %v1838, %v1834
        %v1840 = vlaneseq
        %v1841 = vshrl.u32 %v1840, 7
        %v1842 = vsub.s32 %v570, %v1841
        %v1843 = vrot.slane %v1664, %v1842
        %v1844 = vsel %vm575, %v1843, %v1839
        %v1845 = vlaneseq
        %v1846 = vshrl.u32 %v1845, 7
        %v1847 = vsub.s32 %v577, %v1846
        %v1848 = vrot.slane %v1667, %v1847
        %v1849 = vsel %vm582, %v1848, %v1844
        %v1850 = vlaneseq
        %v1851 = vshrl.u32 %v1850, 7
        %v1852 = vsub.s32 %v584, %v1851
        %v1853 = vrot.slane %v1670, %v1852
        %v1854 = vsel %vm589, %v1853, %v1849
        %v1855 = vlaneseq
        %v1856 = vshrl.u32 %v1855, 7
        %v1857 = vsub.s32 %v591, %v1856
        %v1858 = vrot.slane %v1673, %v1857
        %v1859 = vsel %vm596, %v1858, %v1854
        %v1860 = vlaneseq
        %v1861 = vshrl.u32 %v1860, 7
        %v1862 = vsub.s32 %v598, %v1861
        %v1863 = vrot.slane %v1676, %v1862
        %v1864 = vsel %vm603, %v1863, %v1859
        %v1865 = vlaneseq
        %v1866 = vshrl.u32 %v1865, 7
        %v1867 = vsub.s32 %v605, %v1866
        %v1868 = vrot.slane %v1679, %v1867
        %v1869 = vsel %vm610, %v1868, %v1864
        %v1870 = vsel %vm691, %v1869, %v1790
        %v1872 = vadd.f32 %v1519, %v1870
        %1873 = vst [vmem:[#allocation4] sm:$0x3] %v1872
        %p1874 = scmp.eq.s32.totalorder %s34, 1
        // Predicated region
        $region41: #{tpu_custom_call.1} parent=27 // pred_check
          %p1875 = pneg %p1874
        $region42: #{tpu_custom_call.1} parent=27 // pred_check_branch
          %1877 = sbr.rel (%p1875) target = $region44
        $region43: #{tpu_custom_call.1} parent=27 // pred_region
          %vm1878 = vcmp.ne.s32.totalorder %v371, 4294967196
          %v1879 = vld [vmem:[#allocation2] sm:$0x3]
          %v1880 = vld [vmem:[#allocation3] sm:$0x3]
          %v1881 = vlog2.pop %v1880
          %v1882 = vmul.f32 %v1881, 0.6931472
          %v1883 = vadd.f32 %v1879, %v1882
          %v1884 = vld [vmem:[#allocation4] sm:$0x3]
          %v1885 = vsub.f32 %v1883, %v1884
          %v1886 = vsel %vm1878, %v1885, 0.0
          %vm1887 = vcmask 1041408
          %v1888 = vsel %vm1887, %v1886, 0.0
          %1889 = vadd.xlane.f32.xlu0 %v1888
          %v1890 = vpop.xlane.xlu0 %1889
          %v1891 = vrot.slane %v1890, 4
          %v1892 = vadd.f32 %v1890, %v1891
          %v1893 = vrot.slane %v1892, 2
          %v1894 = vadd.f32 %v1892, %v1893
          %v1895 = vrot.slane %v1894, 1
          %v1896 = vadd.f32 %v1894, %v1895
          %s1897 = vtos %v1896
          %v1898 = vstv %s1897
          %1899 = vst [vmem:[%s290] sm:$0xff] %v1898
          %v1900 = vsel %vm1878, 1, 0
          %v1901 = vcvt.s32.f32 %v1900
          %v1902 = vsel %vm1887, %v1901, 0.0
          %1903 = vadd.xlane.f32.xlu0 %v1902
          %v1904 = vpop.xlane.xlu0 %1903
          %v1905 = vrot.slane %v1904, 4
          %v1906 = vadd.f32 %v1904, %v1905
          %v1907 = vrot.slane %v1906, 2
          %v1908 = vadd.f32 %v1906, %v1907
          %v1909 = vrot.slane %v1908, 1
          %v1910 = vadd.f32 %v1908, %v1909
          %s1911 = vtos %v1910
          %v1912 = vstv %s1911
          %1913 = vst [vmem:[%s297] sm:$0xff] %v1912
        $region44: #{tpu_custom_call.1} parent=27 // pred_fallthru
          _
        %s1914 = sand.u32 %s114, 1
        %s1915 = scalar_lea.sflag [#allocation7], %s1914
        %s1916 = sand.u32 %s114, 1
        %s1917 = smul.addr %s1916, 8
        %s1918 = scalar_lea.vmem [#allocation10], %s1917
        %s1919 = sand.u32 %s142, 1
        %s1920 = scalar_lea.sflag [#allocation12], %s1919
        %s1921 = sand.u32 %s142, 1
        %s1922 = smul.addr %s1921, 8
        %s1923 = scalar_lea.vmem [#allocation11], %s1922
        // Predicated region
        $region45: #{tpu_custom_call.1} parent=27 // pred_check
          %p1924 = pneg %p124
        $region46: #{tpu_custom_call.1} parent=27 // pred_check_branch
          %1926 = sbr.rel (%p1924) target = $region48
        $region47: #{tpu_custom_call.1} parent=27 // pred_region
          %s1928 = ssub.s32 128, 128
          %1929 = vsyncadd %s1915, %s1928
          %s1930 = smul.addr %s32, 2
          %s1931 = sadd.s32 %s33, %s1930
          %s1932 = smul.addr %s1931, 128
          %s1933 = scalar_lea.hbm %s2, %s1932
          %s1935 = sshll.u32 %s1918, 4
          %s1936 = int_to_ptr.vmem [resolvable:$true] %s1935
          %1938 = dma.vmem_to_hbm [thread:$0]  %s1936, 128, %s1933, %s1915
        $region48: #{tpu_custom_call.1} parent=27 // pred_fallthru
          _
        // Predicated region
        $region49: #{tpu_custom_call.1} parent=27 // pred_check
          %p1939 = pneg %p152
        $region50: #{tpu_custom_call.1} parent=27 // pred_check_branch
          %1941 = sbr.rel (%p1939) target = $region52
        $region51: #{tpu_custom_call.1} parent=27 // pred_region
          %s1943 = ssub.s32 128, 128
          %1944 = vsyncadd %s1920, %s1943
          %s1945 = smul.addr %s32, 2
          %s1946 = sadd.s32 %s33, %s1945
          %s1947 = smul.addr %s1946, 128
          %s1948 = scalar_lea.hbm %s3, %s1947
          %s1950 = sshll.u32 %s1923, 4
          %s1951 = int_to_ptr.vmem [resolvable:$true] %s1950
          %1953 = dma.vmem_to_hbm [thread:$0]  %s1951, 128, %s1948, %s1920
        $region52: #{tpu_custom_call.1} parent=27 // pred_fallthru
          _
      $region28: #{tpu_custom_call.1} parent=5 // pred_fallthru
        _
      %p1954 = scmp.le.s32.totalorder 2, %s22
      // Predicated region
      $region53: #{tpu_custom_call.1} parent=5 // pred_check
        %p1955 = pneg %p1954
      $region54: #{tpu_custom_call.1} parent=5 // pred_check_branch
        %1957 = sbr.rel (%p1955) target = $region56
      $region55: #{tpu_custom_call.1} parent=5 // pred_region
        %s1958 = ssub.s32 %s22, 2
        // Predicated region
        $region57: #{tpu_custom_call.1} parent=55 // pred_check
          %p1959 = pneg %p130
        $region58: #{tpu_custom_call.1} parent=55 // pred_check_branch
          %1961 = sbr.rel (%p1959) target = $region60
        $region59: #{tpu_custom_call.1} parent=55 // pred_region
          %s1962 = sand.u32 %s115, 1
          %s1963 = scalar_lea.sflag [#allocation7], %s1962
          %s1964 = sand.u32 %s115, 1
          %s1965 = smul.addr %s1964, 8
          %s1966 = scalar_lea.vmem [#allocation10], %s1965
          %1967 = dma.done %s1963, 128
        $region60: #{tpu_custom_call.1} parent=55 // pred_fallthru
          _
        // Predicated region
        $region61: #{tpu_custom_call.1} parent=55 // pred_check
          %p1968 = pneg %p158
        $region62: #{tpu_custom_call.1} parent=55 // pred_check_branch
          %1970 = sbr.rel (%p1968) target = $region64
        $region63: #{tpu_custom_call.1} parent=55 // pred_region
          %s1971 = sand.u32 %s143, 1
          %s1972 = scalar_lea.sflag [#allocation12], %s1971
          %s1973 = sand.u32 %s143, 1
          %s1974 = smul.addr %s1973, 8
          %s1975 = scalar_lea.vmem [#allocation11], %s1974
          %1976 = dma.done %s1972, 128
        $region64: #{tpu_custom_call.1} parent=55 // pred_fallthru
          _
      $region56: #{tpu_custom_call.1} parent=5 // pred_fallthru
        _
    $region6: #{tpu_custom_call.1} parent=1 // loop_footer
      %s26 = sadd.s32 1, %s22
    $region7: #{tpu_custom_call.1} parent=1 // loop_footer_branch
      %21 = sbr.rel target = $region3
    $region8: #{tpu_custom_call.1} parent=1 // loop_exit
      _
    %1977 = vsyncpa [#allocation6], 1
    %s1978 = scalar_lea.sflag [#allocation6], 1
    %1979 = vsyncpa %s1978, 1
    %1980 = vsyncpa [#allocation9], 1
    %s1981 = scalar_lea.sflag [#allocation9], 1
    %1982 = vsyncpa %s1981, 1
    %1983 = vsyncpa [#allocation7], 1
    %s1984 = scalar_lea.sflag [#allocation7], 1
    %1985 = vsyncpa %s1984, 1
    %1986 = vsyncpa [#allocation12], 1
    %s1987 = scalar_lea.sflag [#allocation12], 1
    %1988 = vsyncpa %s1987, 1

</llo_original>
